<compile_context>
chip_gen: v7x
topology: tpu7x:2x2x1
jax: 0.10.0
libtpu: 0.0.40
codegen_flags: <defaults>
</compile_context>

<pallas_src>
import math

import jax
import jax.numpy as jnp
import numpy as np
from jax import lax
from jax.experimental import pallas as pl
from jax.experimental.pallas import tpu as pltpu

NUM_GROUPS = 32
EPS = 1e-6


def _attn_kernel(gn_scale_ref, gn_shift_ref, xq_ref, xkv_ref,
                 wq_ref, bq_ref, wkv_ref, bkv_ref, wp_ref, bp_ref,
                 o_ref,
                 q_scr, m_scr, l_scr, acc_scr):
    """One (batch, query-tile) per (axis0, axis1); axis2 iterates KV tiles."""
    ki = pl.program_id(2)
    nk = pl.num_programs(2)
    c = xq_ref.shape[2]

    # ---- first KV tile: build normalized+scaled Q, reset accumulators ----
    @pl.when(ki == 0)
    def _init():
        xq = xq_ref[0]                                          # (TQ, C) f32
        hq = xq * gn_scale_ref[0] + gn_shift_ref[0]             # GroupNorm (affine folded)
        q = jnp.dot(hq.astype(jnp.bfloat16), wq_ref[...],
                    preferred_element_type=jnp.float32) + bq_ref[...]
        q_scr[...] = q.astype(jnp.bfloat16)                     # 1/sqrt(C) folded into wq/bq
        m_scr[...] = jnp.full(m_scr.shape, -jnp.inf, dtype=jnp.float32)
        l_scr[...] = jnp.zeros(l_scr.shape, dtype=jnp.float32)
        acc_scr[...] = jnp.zeros(acc_scr.shape, dtype=jnp.float32)

    # ---- K/V tile: GroupNorm + fused K|V projection (one (C,2C) MXU op) ----
    hk = (xkv_ref[0] * gn_scale_ref[0] + gn_shift_ref[0]).astype(jnp.bfloat16)
    kv = jnp.dot(hk, wkv_ref[...],
                 preferred_element_type=jnp.float32) + bkv_ref[...]   # (TK, 2C) f32
    k = kv[:, :c].astype(jnp.bfloat16)
    v = kv[:, c:].astype(jnp.bfloat16)

    # ---- online softmax over KV tiles (scores never exceed (TQ, TK)) ----
    s = lax.dot_general(q_scr[...], k,
                        dimension_numbers=(((1,), (1,)), ((), ())),
                        preferred_element_type=jnp.float32)           # (TQ, TK)
    m_prev = m_scr[...]
    m_new = jnp.maximum(m_prev, jnp.max(s, axis=-1, keepdims=True))
    alpha = jnp.exp(m_prev - m_new)
    p = jnp.exp(s - m_new)
    l_scr[...] = alpha * l_scr[...] + jnp.sum(p, axis=-1, keepdims=True)
    acc_scr[...] = alpha * acc_scr[...] + jnp.dot(
        p.astype(jnp.bfloat16), v, preferred_element_type=jnp.float32)
    m_scr[...] = m_new

    # ---- last KV tile: deferred softmax normalization, proj_out, residual ----
    @pl.when(ki == nk - 1)
    def _fin():
        inv_l = pl.reciprocal(l_scr[...], approx=True)
        ho = (acc_scr[...] * inv_l).astype(jnp.bfloat16)               # (TQ, C)
        proj = jnp.dot(ho, wp_ref[...],
                       preferred_element_type=jnp.float32) + bp_ref[...]
        o_ref[0] = xq_ref[0] + proj                                    # residual in f32


def attn_block_pallas(x_nchw, params, *, tq=128, tk=128, interpret=False):
    """x_nchw: (N, C, H, W) float32 (PyTorch layout). Returns (N, C, H, W)."""
    gamma, beta, wq, bq, wk, bk, wv, bv, wp, bp = params
    N, C, H, W = x_nchw.shape
    HW = H * W
    assert C % NUM_GROUPS == 0, "GroupNorm(32) requires C % 32 == 0"

    # NCHW -> (N, HW, C): channels on the lane axis (layout plumbing, XLA side).
    x2 = jnp.transpose(x_nchw, (0, 2, 3, 1)).astype(jnp.float32).reshape(N, HW, C)

    tq = min(tq, HW)
    tk = min(tk, HW)
    assert HW % tq == 0 and HW % tk == 0 and tq % 8 == 0 and tk % 8 == 0

    # --- GroupNorm stats precomputed once per image (two-pass, f32), folded
    #     into a per-(batch, channel) affine:  h = x * gn_scale + gn_shift ---
    cg = C // NUM_GROUPS
    xg = x2.reshape(N, HW, NUM_GROUPS, cg)
    mean = jnp.mean(xg, axis=(1, 3))                                   # (N, G)
    var = jnp.mean(jnp.square(xg - mean[:, None, :, None]), axis=(1, 3))
    inv_std = lax.rsqrt(var + EPS)                                     # (N, G)
    mean_c = jnp.repeat(mean, cg, axis=1)                              # (N, C)
    inv_std_c = jnp.repeat(inv_std, cg, axis=1)
    gn_scale = (gamma * inv_std_c)[:, None, :]                         # (N, 1, C)
    gn_shift = (beta - gamma * inv_std_c * mean_c)[:, None, :]         # (N, 1, C)

    # --- parameter prep: fold softmax scale into Q, fuse K|V, bf16 weights ---
    scale = float(C) ** (-0.5)
    wq_s = (wq * scale).astype(jnp.bfloat16)
    bq_s = (bq * scale).astype(jnp.float32)
    w_kv = jnp.concatenate([wk, wv], axis=1).astype(jnp.bfloat16)      # (C, 2C)
    b_kv = jnp.concatenate([bk, bv], axis=1).astype(jnp.float32)       # (1, 2C)
    wp_b = wp.astype(jnp.bfloat16)
    bp_f = bp.astype(jnp.float32)

    grid = (N, HW // tq, HW // tk)

    def full2d(p):
        return pl.BlockSpec(p.shape, lambda b, qi, ki: (0, 0))

    flops = N * (2 * HW * C * C * 4 + 2 * HW * HW * C * 2)
    cost = pl.CostEstimate(
        flops=int(flops),
        transcendentals=int(N * HW * HW),
        bytes_accessed=int(3 * N * HW * C * 4 + 4 * C * C * 2))

    out2 = pl.pallas_call(
        _attn_kernel,
        out_shape=jax.ShapeDtypeStruct((N, HW, C), jnp.float32),
        grid_spec=pltpu.PrefetchScalarGridSpec(
            num_scalar_prefetch=0,
            grid=grid,
            in_specs=[
                pl.BlockSpec((1, 1, C), lambda b, qi, ki: (b, 0, 0)),    # gn_scale
                pl.BlockSpec((1, 1, C), lambda b, qi, ki: (b, 0, 0)),    # gn_shift
                pl.BlockSpec((1, tq, C), lambda b, qi, ki: (b, qi, 0)),  # x (query tile)
                pl.BlockSpec((1, tk, C), lambda b, qi, ki: (b, ki, 0)),  # x (KV tile)
                full2d(wq_s), full2d(bq_s),
                full2d(w_kv), full2d(b_kv),
                full2d(wp_b), full2d(bp_f),
            ],
            out_specs=pl.BlockSpec((1, tq, C), lambda b, qi, ki: (b, qi, 0)),
            scratch_shapes=[
                pltpu.VMEM((tq, C), jnp.bfloat16),   # scaled Q tile
                pltpu.VMEM((tq, 1), jnp.float32),    # running max m
                pltpu.VMEM((tq, 1), jnp.float32),    # running denom l
                pltpu.VMEM((tq, C), jnp.float32),    # output accumulator
            ]),
        compiler_params=pltpu.CompilerParams(
            dimension_semantics=("parallel", "parallel", "arbitrary"),
            vmem_limit_bytes=64 * 1024 * 1024),
        cost_estimate=cost,
        interpret=interpret,
    )(gn_scale, gn_shift, x2, x2, wq_s, bq_s, w_kv, b_kv, wp_b, bp_f)

    return jnp.transpose(out2.reshape(N, H, W, C), (0, 3, 1, 2))


def make_params(key, C):
    """Deterministic synthetic params (shapes match the PyTorch module).
    1x1 conv weights (Cout, Cin, 1, 1) are stored as (Cin, Cout) so h @ W applies them."""
    ks = jax.random.split(key, 8)
    scale = 1.0 / math.sqrt(C)
    wq = jax.random.normal(ks[0], (C, C), jnp.float32) * scale
    wk = jax.random.normal(ks[1], (C, C), jnp.float32) * scale
    wv = jax.random.normal(ks[2], (C, C), jnp.float32) * scale
    wp = jax.random.normal(ks[3], (C, C), jnp.float32) * scale
    bq = jax.random.normal(ks[4], (1, C), jnp.float32) * 0.1
    bk = jax.random.normal(ks[5], (1, C), jnp.float32) * 0.1
    bv = jax.random.normal(ks[6], (1, C), jnp.float32) * 0.1
    bp = jax.random.normal(ks[7], (1, C), jnp.float32) * 0.1
    gamma = (1.0 + 0.05 * jnp.arange(C, dtype=jnp.float32) / C).reshape(1, C)
    beta = (0.01 * jnp.arange(C, dtype=jnp.float32) / C).reshape(1, C)
    return (gamma, beta, wq, bq, wk, bk, wv, bv, wp, bp)


def ref_forward(x_nchw, params):
    """Pure-JAX f32 reference matching the PyTorch forward semantics."""
    gamma, beta, wq, bq, wk, bk, wv, bv, wp, bp = params
    N, C, H, W = x_nchw.shape
    HW = H * W
    cg = C // NUM_GROUPS
    x = jnp.transpose(x_nchw, (0, 2, 3, 1)).reshape(N, HW, C)
    xg = x.reshape(N, HW, NUM_GROUPS, cg)
    mean = xg.mean(axis=(1, 3), keepdims=True)
    var = ((xg - mean) ** 2).mean(axis=(1, 3), keepdims=True)
    h = ((xg - mean) / jnp.sqrt(var + EPS)).reshape(N, HW, C) * gamma + beta
    q = h @ wq + bq
    k = h @ wk + bk
    v = h @ wv + bv
    s = jnp.einsum("nqc,nkc->nqk", q, k) * (float(C) ** -0.5)
    a = jax.nn.softmax(s, axis=-1)
    ho = jnp.einsum("nqk,nkc->nqc", a, v)
    out = x + (ho @ wp + bp)
    return jnp.transpose(out.reshape(N, H, W, C), (0, 3, 1, 2))


if __name__ == "__main__":
    key = jax.random.PRNGKey(0)
    kx, kp = jax.random.split(key)

    # NCHW like the PyTorch module.  C multiple of 32 (GroupNorm) and 128
    # (lane-dense stores); HW=256 -> grid (2, 2, 2) exercises the online softmax.
    N, C, H, W = 2, 128, 16, 16
    x = jax.random.normal(kx, (N, C, H, W), jnp.float32)
    params = make_params(kp, C)

    out = attn_block_pallas(x, params)
    out = jax.block_until_ready(out)

    ref = ref_forward(x, params)
    # bf16 MXU operands (f32 accumulation) -> loosened tolerance vs. f32 reference.
    np.testing.assert_allclose(np.asarray(out), np.asarray(ref),
                               rtol=5e-2, atol=1e-1)
    print("KERNEL_OK")
</pallas_src>

<mosaic_0001>
module attributes {stable_mosaic.version = 11 : i64} {
  func.func @_attn_kernel(%arg0: i32, %arg1: i32, %arg2: i32, %arg3: memref<1x1x128xf32, #tpu.memory_space<vmem>>, %arg4: memref<1x1x128xf32, #tpu.memory_space<vmem>>, %arg5: memref<1x128x128xf32, #tpu.memory_space<vmem>>, %arg6: memref<1x128x128xf32, #tpu.memory_space<vmem>>, %arg7: memref<128x128xbf16, #tpu.memory_space<vmem>>, %arg8: memref<1x128xf32, #tpu.memory_space<vmem>>, %arg9: memref<128x256xbf16, #tpu.memory_space<vmem>>, %arg10: memref<1x256xf32, #tpu.memory_space<vmem>>, %arg11: memref<128x128xbf16, #tpu.memory_space<vmem>>, %arg12: memref<1x128xf32, #tpu.memory_space<vmem>>, %arg13: memref<1x128x128xf32, #tpu.memory_space<vmem>>, %arg14: memref<128x128xbf16, #tpu.memory_space<vmem>>, %arg15: memref<128x1xf32, #tpu.memory_space<vmem>>, %arg16: memref<128x1xf32, #tpu.memory_space<vmem>>, %arg17: memref<128x128xf32, #tpu.memory_space<vmem>>) attributes {dimension_semantics = [#tpu.dimension_semantics<parallel>, #tpu.dimension_semantics<parallel>, #tpu.dimension_semantics<arbitrary>], iteration_bounds = array<i64: 2, 2, 2>, scalar_prefetch = 0 : i64, scratch_operands = 4 : i64, tpu.core_type = #tpu.core_type<tc>, window_params = [{transform_indices = @transform_0, window_bounds = array<i64: 1, 1, 128>}, {transform_indices = @transform_1, window_bounds = array<i64: 1, 1, 128>}, {transform_indices = @transform_2, window_bounds = array<i64: 1, 128, 128>}, {transform_indices = @transform_3, window_bounds = array<i64: 1, 128, 128>}, {pipeline_mode = #tpu.pipeline_mode<synchronous>, transform_indices = @transform_4, window_bounds = array<i64: 128, 128>}, {pipeline_mode = #tpu.pipeline_mode<synchronous>, transform_indices = @transform_5, window_bounds = array<i64: 1, 128>}, {pipeline_mode = #tpu.pipeline_mode<synchronous>, transform_indices = @transform_6, window_bounds = array<i64: 128, 256>}, {pipeline_mode = #tpu.pipeline_mode<synchronous>, transform_indices = @transform_7, window_bounds = array<i64: 1, 256>}, {pipeline_mode = #tpu.pipeline_mode<synchronous>, transform_indices = @transform_8, window_bounds = array<i64: 128, 128>}, {pipeline_mode = #tpu.pipeline_mode<synchronous>, transform_indices = @transform_9, window_bounds = array<i64: 1, 128>}, {transform_indices = @transform_10, window_bounds = array<i64: 1, 128, 128>}]} {
    %c0_i32 = arith.constant 0 : i32
    %0 = arith.cmpi eq, %arg2, %c0_i32 : i32
    %1 = arith.extui %0 : i1 to i32
    %c0_i32_0 = arith.constant 0 : i32
    %2 = arith.cmpi ne, %1, %c0_i32_0 : i32
    scf.if %2 {
      %c0_32 = arith.constant 0 : index
      %c0_33 = arith.constant 0 : index
      %c0_34 = arith.constant 0 : index
      %51 = vector.load %arg5[%c0_32, %c0_33, %c0_34] : memref<1x128x128xf32, #tpu.memory_space<vmem>>, vector<1x128x128xf32>
      %52 = vector.shape_cast %51 : vector<1x128x128xf32> to vector<128x128xf32>
      %c0_35 = arith.constant 0 : index
      %c0_36 = arith.constant 0 : index
      %c0_37 = arith.constant 0 : index
      %53 = vector.load %arg3[%c0_35, %c0_36, %c0_37] : memref<1x1x128xf32, #tpu.memory_space<vmem>>, vector<1x1x128xf32>
      %54 = vector.shape_cast %53 : vector<1x1x128xf32> to vector<1x128xf32>
      %55 = vector.broadcast %54 : vector<1x128xf32> to vector<128x128xf32>
      %56 = arith.mulf %52, %55 : vector<128x128xf32>
      %c0_38 = arith.constant 0 : index
      %c0_39 = arith.constant 0 : index
      %c0_40 = arith.constant 0 : index
      %57 = vector.load %arg4[%c0_38, %c0_39, %c0_40] : memref<1x1x128xf32, #tpu.memory_space<vmem>>, vector<1x1x128xf32>
      %58 = vector.shape_cast %57 : vector<1x1x128xf32> to vector<1x128xf32>
      %59 = vector.broadcast %58 : vector<1x128xf32> to vector<128x128xf32>
      %60 = arith.addf %56, %59 : vector<128x128xf32>
      %61 = arith.truncf %60 : vector<128x128xf32> to vector<128x128xbf16>
      %c0_41 = arith.constant 0 : index
      %c0_42 = arith.constant 0 : index
      %62 = vector.load %arg7[%c0_41, %c0_42] : memref<128x128xbf16, #tpu.memory_space<vmem>>, vector<128x128xbf16>
      %cst_43 = arith.constant dense<0.000000e+00> : vector<128x128xf32>
      %63 = tpu.matmul %61, %62, %cst_43 {dimension_numbers = #tpu.dot_dimension_numbers<[1], [0], [0], [1], [0, 0, 1, 1], [], []>} : vector<128x128xbf16>, vector<128x128xbf16>, vector<128x128xf32> -> vector<128x128xf32>
      %c0_44 = arith.constant 0 : index
      %c0_45 = arith.constant 0 : index
      %64 = vector.load %arg8[%c0_44, %c0_45] : memref<1x128xf32, #tpu.memory_space<vmem>>, vector<1x128xf32>
      %65 = vector.broadcast %64 : vector<1x128xf32> to vector<128x128xf32>
      %66 = arith.addf %63, %65 : vector<128x128xf32>
      %67 = arith.truncf %66 : vector<128x128xf32> to vector<128x128xbf16>
      %c0_46 = arith.constant 0 : index
      %c0_47 = arith.constant 0 : index
      %68 = vector.load %arg14[%c0_46, %c0_47] : memref<128x128xbf16, #tpu.memory_space<vmem>>, vector<128x128xbf16>
      tpu.vector_store %arg14[%c0_46, %c0_47], %67 {strides = array<i32>} : memref<128x128xbf16, #tpu.memory_space<vmem>>, vector<128x128xbf16>,
      %cst_48 = arith.constant 0xFF800000 : f32
      %69 = vector.broadcast %cst_48 : f32 to vector<128x1xf32>
      %c0_49 = arith.constant 0 : index
      %c0_50 = arith.constant 0 : index
      %70 = vector.load %arg15[%c0_49, %c0_50] : memref<128x1xf32, #tpu.memory_space<vmem>>, vector<128x1xf32>
      tpu.vector_store %arg15[%c0_49, %c0_50], %69 {strides = array<i32>} : memref<128x1xf32, #tpu.memory_space<vmem>>, vector<128x1xf32>,
      %cst_51 = arith.constant 0.000000e+00 : f32
      %71 = vector.broadcast %cst_51 : f32 to vector<128x1xf32>
      %c0_52 = arith.constant 0 : index
      %c0_53 = arith.constant 0 : index
      %72 = vector.load %arg16[%c0_52, %c0_53] : memref<128x1xf32, #tpu.memory_space<vmem>>, vector<128x1xf32>
      tpu.vector_store %arg16[%c0_52, %c0_53], %71 {strides = array<i32>} : memref<128x1xf32, #tpu.memory_space<vmem>>, vector<128x1xf32>,
      %cst_54 = arith.constant 0.000000e+00 : f32
      %73 = vector.broadcast %cst_54 : f32 to vector<128x128xf32>
      %c0_55 = arith.constant 0 : index
      %c0_56 = arith.constant 0 : index
      %74 = vector.load %arg17[%c0_55, %c0_56] : memref<128x128xf32, #tpu.memory_space<vmem>>, vector<128x128xf32>
      tpu.vector_store %arg17[%c0_55, %c0_56], %73 {strides = array<i32>} : memref<128x128xf32, #tpu.memory_space<vmem>>, vector<128x128xf32>,
    } else {
    }
    %c0 = arith.constant 0 : index
    %c0_1 = arith.constant 0 : index
    %c0_2 = arith.constant 0 : index
    %3 = vector.load %arg6[%c0, %c0_1, %c0_2] : memref<1x128x128xf32, #tpu.memory_space<vmem>>, vector<1x128x128xf32>
    %4 = vector.shape_cast %3 : vector<1x128x128xf32> to vector<128x128xf32>
    %c0_3 = arith.constant 0 : index
    %c0_4 = arith.constant 0 : index
    %c0_5 = arith.constant 0 : index
    %5 = vector.load %arg3[%c0_3, %c0_4, %c0_5] : memref<1x1x128xf32, #tpu.memory_space<vmem>>, vector<1x1x128xf32>
    %6 = vector.shape_cast %5 : vector<1x1x128xf32> to vector<1x128xf32>
    %7 = vector.broadcast %6 : vector<1x128xf32> to vector<128x128xf32>
    %8 = arith.mulf %4, %7 : vector<128x128xf32>
    %c0_6 = arith.constant 0 : index
    %c0_7 = arith.constant 0 : index
    %c0_8 = arith.constant 0 : index
    %9 = vector.load %arg4[%c0_6, %c0_7, %c0_8] : memref<1x1x128xf32, #tpu.memory_space<vmem>>, vector<1x1x128xf32>
    %10 = vector.shape_cast %9 : vector<1x1x128xf32> to vector<1x128xf32>
    %11 = vector.broadcast %10 : vector<1x128xf32> to vector<128x128xf32>
    %12 = arith.addf %8, %11 : vector<128x128xf32>
    %13 = arith.truncf %12 : vector<128x128xf32> to vector<128x128xbf16>
    %c0_9 = arith.constant 0 : index
    %c0_10 = arith.constant 0 : index
    %14 = vector.load %arg9[%c0_9, %c0_10] : memref<128x256xbf16, #tpu.memory_space<vmem>>, vector<128x256xbf16>
    %cst = arith.constant dense<0.000000e+00> : vector<128x256xf32>
    %15 = tpu.matmul %13, %14, %cst {dimension_numbers = #tpu.dot_dimension_numbers<[1], [0], [0], [1], [0, 0, 1, 1], [], []>} : vector<128x128xbf16>, vector<128x256xbf16>, vector<128x256xf32> -> vector<128x256xf32>
    %c0_11 = arith.constant 0 : index
    %c0_12 = arith.constant 0 : index
    %16 = vector.load %arg10[%c0_11, %c0_12] : memref<1x256xf32, #tpu.memory_space<vmem>>, vector<1x256xf32>
    %17 = vector.broadcast %16 : vector<1x256xf32> to vector<128x256xf32>
    %18 = arith.addf %15, %17 : vector<128x256xf32>
    %19 = vector.extract_strided_slice %18 {offsets = [0, 0], sizes = [128, 128], strides = [1, 1]} : vector<128x256xf32> to vector<128x128xf32>
    %20 = arith.truncf %19 : vector<128x128xf32> to vector<128x128xbf16>
    %21 = vector.extract_strided_slice %18 {offsets = [0, 128], sizes = [128, 128], strides = [1, 1]} : vector<128x256xf32> to vector<128x128xf32>
    %22 = arith.truncf %21 : vector<128x128xf32> to vector<128x128xbf16>
    %c0_13 = arith.constant 0 : index
    %c0_14 = arith.constant 0 : index
    %23 = vector.load %arg14[%c0_13, %c0_14] : memref<128x128xbf16, #tpu.memory_space<vmem>>, vector<128x128xbf16>
    %cst_15 = arith.constant dense<0.000000e+00> : vector<128x128xf32>
    %24 = tpu.matmul %23, %20, %cst_15 {dimension_numbers = #tpu.dot_dimension_numbers<[1], [1], [0], [0], [0, 0, 1, 0], [], []>} : vector<128x128xbf16>, vector<128x128xbf16>, vector<128x128xf32> -> vector<128x128xf32>
    %c0_16 = arith.constant 0 : index
    %c0_17 = arith.constant 0 : index
    %25 = vector.load %arg15[%c0_16, %c0_17] : memref<128x1xf32, #tpu.memory_space<vmem>>, vector<128x1xf32>
    %cst_18 = arith.constant dense<0xFF800000> : vector<128xf32>
    %26 = vector.multi_reduction <maximumf>, %24, %cst_18 [1] : vector<128x128xf32> to vector<128xf32>
    %27 = vector.shape_cast %26 : vector<128xf32> to vector<128x1xf32>
    %28 = arith.maximumf %25, %27 : vector<128x1xf32>
    %29 = arith.subf %25, %28 : vector<128x1xf32>
    %30 = math.exp %29 : vector<128x1xf32>
    %31 = vector.broadcast %28 : vector<128x1xf32> to vector<128x128xf32>
    %32 = arith.subf %24, %31 : vector<128x128xf32>
    %33 = math.exp %32 : vector<128x128xf32>
    %c0_19 = arith.constant 0 : index
    %c0_20 = arith.constant 0 : index
    %34 = vector.load %arg16[%c0_19, %c0_20] : memref<128x1xf32, #tpu.memory_space<vmem>>, vector<128x1xf32>
    %35 = arith.mulf %30, %34 : vector<128x1xf32>
    %cst_21 = arith.constant dense<0.000000e+00> : vector<128xf32>
    %36 = vector.multi_reduction <add>, %33, %cst_21 [1] : vector<128x128xf32> to vector<128xf32>
    %37 = vector.shape_cast %36 : vector<128xf32> to vector<128x1xf32>
    %38 = arith.addf %35, %37 : vector<128x1xf32>
    %c0_22 = arith.constant 0 : index
    %c0_23 = arith.constant 0 : index
    %39 = vector.load %arg16[%c0_22, %c0_23] : memref<128x1xf32, #tpu.memory_space<vmem>>, vector<128x1xf32>
    tpu.vector_store %arg16[%c0_22, %c0_23], %38 {strides = array<i32>} : memref<128x1xf32, #tpu.memory_space<vmem>>, vector<128x1xf32>,
    %c0_24 = arith.constant 0 : index
    %c0_25 = arith.constant 0 : index
    %40 = vector.load %arg17[%c0_24, %c0_25] : memref<128x128xf32, #tpu.memory_space<vmem>>, vector<128x128xf32>
    %41 = vector.broadcast %30 : vector<128x1xf32> to vector<128x128xf32>
    %42 = arith.mulf %41, %40 : vector<128x128xf32>
    %43 = arith.truncf %33 : vector<128x128xf32> to vector<128x128xbf16>
    %cst_26 = arith.constant dense<0.000000e+00> : vector<128x128xf32>
    %44 = tpu.matmul %43, %22, %cst_26 {dimension_numbers = #tpu.dot_dimension_numbers<[1], [0], [0], [1], [0, 0, 1, 1], [], []>} : vector<128x128xbf16>, vector<128x128xbf16>, vector<128x128xf32> -> vector<128x128xf32>
    %45 = arith.addf %42, %44 : vector<128x128xf32>
    %c0_27 = arith.constant 0 : index
    %c0_28 = arith.constant 0 : index
    %46 = vector.load %arg17[%c0_27, %c0_28] : memref<128x128xf32, #tpu.memory_space<vmem>>, vector<128x128xf32>
    tpu.vector_store %arg17[%c0_27, %c0_28], %45 {strides = array<i32>} : memref<128x128xf32, #tpu.memory_space<vmem>>, vector<128x128xf32>,
    %c0_29 = arith.constant 0 : index
    %c0_30 = arith.constant 0 : index
    %47 = vector.load %arg15[%c0_29, %c0_30] : memref<128x1xf32, #tpu.memory_space<vmem>>, vector<128x1xf32>
    tpu.vector_store %arg15[%c0_29, %c0_30], %28 {strides = array<i32>} : memref<128x1xf32, #tpu.memory_space<vmem>>, vector<128x1xf32>,
    %c1_i32 = arith.constant 1 : i32
    %48 = arith.cmpi eq, %arg2, %c1_i32 : i32
    %49 = arith.extui %48 : i1 to i32
    %c0_i32_31 = arith.constant 0 : i32
    %50 = arith.cmpi ne, %49, %c0_i32_31 : i32
    scf.if %50 {
      %c0_32 = arith.constant 0 : index
      %c0_33 = arith.constant 0 : index
      %51 = vector.load %arg16[%c0_32, %c0_33] : memref<128x1xf32, #tpu.memory_space<vmem>>, vector<128x1xf32>
      %52 = tpu.reciprocal %51 {approx = true} : vector<128x1xf32> -> vector<128x1xf32>
      %c0_34 = arith.constant 0 : index
      %c0_35 = arith.constant 0 : index
      %53 = vector.load %arg17[%c0_34, %c0_35] : memref<128x128xf32, #tpu.memory_space<vmem>>, vector<128x128xf32>
      %54 = vector.broadcast %52 : vector<128x1xf32> to vector<128x128xf32>
      %55 = arith.mulf %53, %54 : vector<128x128xf32>
      %56 = arith.truncf %55 : vector<128x128xf32> to vector<128x128xbf16>
      %c0_36 = arith.constant 0 : index
      %c0_37 = arith.constant 0 : index
      %57 = vector.load %arg11[%c0_36, %c0_37] : memref<128x128xbf16, #tpu.memory_space<vmem>>, vector<128x128xbf16>
      %cst_38 = arith.constant dense<0.000000e+00> : vector<128x128xf32>
      %58 = tpu.matmul %56, %57, %cst_38 {dimension_numbers = #tpu.dot_dimension_numbers<[1], [0], [0], [1], [0, 0, 1, 1], [], []>} : vector<128x128xbf16>, vector<128x128xbf16>, vector<128x128xf32> -> vector<128x128xf32>
      %c0_39 = arith.constant 0 : index
      %c0_40 = arith.constant 0 : index
      %59 = vector.load %arg12[%c0_39, %c0_40] : memref<1x128xf32, #tpu.memory_space<vmem>>, vector<1x128xf32>
      %60 = vector.broadcast %59 : vector<1x128xf32> to vector<128x128xf32>
      %61 = arith.addf %58, %60 : vector<128x128xf32>
      %c0_41 = arith.constant 0 : index
      %c0_42 = arith.constant 0 : index
      %c0_43 = arith.constant 0 : index
      %62 = vector.load %arg5[%c0_41, %c0_42, %c0_43] : memref<1x128x128xf32, #tpu.memory_space<vmem>>, vector<1x128x128xf32>
      %63 = vector.shape_cast %62 : vector<1x128x128xf32> to vector<128x128xf32>
      %64 = arith.addf %63, %61 : vector<128x128xf32>
      %c0_44 = arith.constant 0 : index
      %c0_45 = arith.constant 0 : index
      %c0_46 = arith.constant 0 : index
      %65 = vector.load %arg13[%c0_44, %c0_45, %c0_46] : memref<1x128x128xf32, #tpu.memory_space<vmem>>, vector<1x128x128xf32>
      %66 = vector.shape_cast %65 : vector<1x128x128xf32> to vector<128x128xf32>
      %67 = vector.shape_cast %64 : vector<128x128xf32> to vector<1x128x128xf32>
      tpu.vector_store %arg13[%c0_44, %c0_45, %c0_46], %67 {strides = array<i32>} : memref<1x128x128xf32, #tpu.memory_space<vmem>>, vector<1x128x128xf32>,
    } else {
    }
    return
  }
  func.func @transform_0(%arg0: i32, %arg1: i32, %arg2: i32) -> (i32, i32, i32) {
    %c0_i32 = arith.constant 0 : i32
    %c0_i32_0 = arith.constant 0 : i32
    %c0_i32_1 = arith.constant 0 : i32
    return %arg0, %c0_i32, %c0_i32_0 : i32, i32, i32
  }
  func.func @transform_1(%arg0: i32, %arg1: i32, %arg2: i32) -> (i32, i32, i32) {
    %c0_i32 = arith.constant 0 : i32
    %c0_i32_0 = arith.constant 0 : i32
    %c0_i32_1 = arith.constant 0 : i32
    return %arg0, %c0_i32, %c0_i32_0 : i32, i32, i32
  }
  func.func @transform_2(%arg0: i32, %arg1: i32, %arg2: i32) -> (i32, i32, i32) {
    %c0_i32 = arith.constant 0 : i32
    %c0_i32_0 = arith.constant 0 : i32
    return %arg0, %arg1, %c0_i32 : i32, i32, i32
  }
  func.func @transform_3(%arg0: i32, %arg1: i32, %arg2: i32) -> (i32, i32, i32) {
    %c0_i32 = arith.constant 0 : i32
    %c0_i32_0 = arith.constant 0 : i32
    return %arg0, %arg2, %c0_i32 : i32, i32, i32
  }
  func.func @transform_4(%arg0: i32, %arg1: i32, %arg2: i32) -> (i32, i32) {
    %c0_i32 = arith.constant 0 : i32
    %c0_i32_0 = arith.constant 0 : i32
    %c0_i32_1 = arith.constant 0 : i32
    return %c0_i32, %c0_i32_0 : i32, i32
  }
  func.func @transform_5(%arg0: i32, %arg1: i32, %arg2: i32) -> (i32, i32) {
    %c0_i32 = arith.constant 0 : i32
    %c0_i32_0 = arith.constant 0 : i32
    %c0_i32_1 = arith.constant 0 : i32
    return %c0_i32, %c0_i32_0 : i32, i32
  }
  func.func @transform_6(%arg0: i32, %arg1: i32, %arg2: i32) -> (i32, i32) {
    %c0_i32 = arith.constant 0 : i32
    %c0_i32_0 = arith.constant 0 : i32
    %c0_i32_1 = arith.constant 0 : i32
    return %c0_i32, %c0_i32_0 : i32, i32
  }
  func.func @transform_7(%arg0: i32, %arg1: i32, %arg2: i32) -> (i32, i32) {
    %c0_i32 = arith.constant 0 : i32
    %c0_i32_0 = arith.constant 0 : i32
    %c0_i32_1 = arith.constant 0 : i32
    return %c0_i32, %c0_i32_0 : i32, i32
  }
  func.func @transform_8(%arg0: i32, %arg1: i32, %arg2: i32) -> (i32, i32) {
    %c0_i32 = arith.constant 0 : i32
    %c0_i32_0 = arith.constant 0 : i32
    %c0_i32_1 = arith.constant 0 : i32
    return %c0_i32, %c0_i32_0 : i32, i32
  }
  func.func @transform_9(%arg0: i32, %arg1: i32, %arg2: i32) -> (i32, i32) {
    %c0_i32 = arith.constant 0 : i32
    %c0_i32_0 = arith.constant 0 : i32
    %c0_i32_1 = arith.constant 0 : i32
    return %c0_i32, %c0_i32_0 : i32, i32
  }
  func.func @transform_10(%arg0: i32, %arg1: i32, %arg2: i32) -> (i32, i32, i32) {
    %c0_i32 = arith.constant 0 : i32
    %c0_i32_0 = arith.constant 0 : i32
    return %arg0, %arg1, %c0_i32 : i32, i32, i32
  }
}

</mosaic_0001>

<llo_original>
// kernel: tpu_custom_call.1
$region0: #{tpu_custom_call.1}
  #allocation0 [shape = 'u32[]', space=smem, size = 0x4, offset = 0x4, fixed_abs, tag = 'smem constant byte address 0x4 - core index']
  #allocation1 [shape = 'u32[144,128]{1,0:T(1,128)}', space=vmem, size = 0x12000, scoped, tag = 'internal scratch']
  #allocation2 [shape = 'bf16[128,128]{1,0:T(16,128)(2,1)}', space=vmem, size = 0x8000, scoped, tag = 'scratch operand']
  #allocation3 [shape = 'f32[128,1]{1,0:T(8,128)}', space=vmem, size = 0x10000, scoped, tag = 'scratch operand']
  #allocation4 [shape = 'f32[128,1]{1,0:T(8,128)}', space=vmem, size = 0x10000, scoped, tag = 'scratch operand']
  #allocation5 [shape = 'f32[128,128]{1,0:T(8,128)}', space=vmem, size = 0x10000, scoped, tag = 'scratch operand']
  %s0 = inlined_call_operand.hbm [shape: f32[2,1,128], index: 0, kind: input, shape index: {}]
  %s1 = inlined_call_operand.hbm [shape: f32[2,1,128], index: 1, kind: input, shape index: {}]
  %s2 = inlined_call_operand.hbm [shape: f32[2,256,128], index: 2, kind: input, shape index: {}]
  %s3 = inlined_call_operand.hbm [shape: f32[2,256,128], index: 3, kind: input, shape index: {}]
  %s4 = inlined_call_operand.hbm [shape: bf16[128,128], index: 4, kind: input, shape index: {}]
  %s5 = inlined_call_operand.hbm [shape: f32[1,128], index: 5, kind: input, shape index: {}]
  %s6 = inlined_call_operand.hbm [shape: bf16[128,256], index: 6, kind: input, shape index: {}]
  %s7 = inlined_call_operand.hbm [shape: f32[1,256], index: 7, kind: input, shape index: {}]
  %s8 = inlined_call_operand.hbm [shape: bf16[128,128], index: 8, kind: input, shape index: {}]
  %s9 = inlined_call_operand.hbm [shape: f32[1,128], index: 9, kind: input, shape index: {}]
  %s10 = inlined_call_operand.hbm [shape: f32[2,256,128], index: 10, kind: output, shape index: {}]
  %s11 = sld [smem:[#allocation0]]
  $region121: #{tpu_custom_call.1} parent=0
    _
  %s13 = ssub.s32 1, %s11
  %s14 = scalar_select 0, %s13, %s11
  $region1: #{tpu_custom_call.1} parent=0
    #allocation6 [shape = 'u8[1024]{0}', space=vmem, size = 0x400, scoped, tag = 'input window, operand 0']
    #allocation7 [shape = 's32[2]{0}', space=sflag, size = 0x8, scoped, tag = 'scoped memory for tpu_custom_call.1']
    #allocation8 [shape = 's32[2]{0}', space=sflag, size = 0x8, scoped, tag = 'scoped memory for tpu_custom_call.1']
    #allocation9 [shape = 'u8[1024]{0}', space=vmem, size = 0x400, scoped, tag = 'input window, operand 1']
    #allocation10 [shape = 's32[2]{0}', space=sflag, size = 0x8, scoped, tag = 'scoped memory for tpu_custom_call.1']
    #allocation11 [shape = 'u8[131072]{0}', space=vmem, size = 0x20000, scoped, tag = 'input window, operand 2']
    #allocation12 [shape = 'u8[131072]{0}', space=vmem, size = 0x20000, scoped, tag = 'input window, operand 3']
    #allocation13 [shape = 's32[2]{0}', space=sflag, size = 0x8, scoped, tag = 'scoped memory for tpu_custom_call.1']
    #allocation14 [shape = 'u8[32768]{0}', space=vmem, size = 0x8000, scoped, tag = 'input window, operand 4, single buffered']
    #allocation15 [shape = 'u8[512]{0}', space=vmem, size = 0x400, scoped, tag = 'input window, operand 5, single buffered']
    #allocation16 [shape = 's32[1]{0}', space=sflag, size = 0x4, scoped, tag = 'scoped memory for tpu_custom_call.1']
    #allocation17 [shape = 'u8[65536]{0}', space=vmem, size = 0x10000, scoped, tag = 'input window, operand 6, single buffered']
    #allocation18 [shape = 'u8[1024]{0}', space=vmem, size = 0x400, scoped, tag = 'input window, operand 7, single buffered']
    #allocation19 [shape = 's32[1]{0}', space=sflag, size = 0x4, scoped, tag = 'scoped memory for tpu_custom_call.1']
    #allocation20 [shape = 'u8[32768]{0}', space=vmem, size = 0x8000, scoped, tag = 'input window, operand 8, single buffered']
    #allocation21 [shape = 'u8[512]{0}', space=vmem, size = 0x400, scoped, tag = 'input window, operand 9, single buffered']
    #allocation22 [shape = 's32[1]{0}', space=sflag, size = 0x4, scoped, tag = 'scoped memory for tpu_custom_call.1']
    #allocation23 [shape = 'u8[131072]{0}', space=vmem, size = 0x20000, scoped, tag = 'output window, operand 0']
    %15 = vsyncpa [#allocation7], 0
    %s16 = scalar_lea.sflag [#allocation7], 1
    %17 = vsyncpa %s16, 0
    %18 = vsyncpa [#allocation10], 0
    %s19 = scalar_lea.sflag [#allocation10], 1
    %20 = vsyncpa %s19, 0
    %21 = vsyncpa [#allocation13], 0
    %s22 = scalar_lea.sflag [#allocation13], 1
    %23 = vsyncpa %s22, 0
    %24 = vsyncpa [#allocation16], 0
    %25 = vsyncpa [#allocation19], 0
    %26 = vsyncpa [#allocation22], 0
    %27 = vsyncpa [#allocation8], 0
    %s28 = scalar_lea.sflag [#allocation8], 1
    %29 = vsyncpa %s28, 0
    loop: start=0, step=1, limit=10
    $region2: #{tpu_custom_call.1} parent=1 // loop_pre_header
      _
    $region3: #{tpu_custom_call.1} parent=1 // loop_header
      %s31 = sphi 0, %s35
      %p32 = scmp.ge.s32.totalorder %s31, 10
      %s38 = sphi 0, %s57
      %s39 = sphi 0, %s53
      %s40 = sphi 0, %s49
      %s41 = sphi 0, %s38
      %s42 = sphi 0, %s39
      %s43 = sphi 0, %s40
      %s44 = sphi 0, %s41
      %s45 = sphi 0, %s42
      %s46 = sphi 0, %s43
      %s60 = sphi 0, %s62
      %s63 = sphi 0, %s60
      %s64 = sphi 0, %s63
      %s80 = sphi 0, %s64
      %s86 = sphi 0, %s88
      %s89 = sphi 0, %s86
      %s90 = sphi 0, %s89
      %s106 = sphi 0, %s90
      %s114 = sphi 0, %s116
      %s117 = sphi 0, %s114
      %s118 = sphi 0, %s117
      %s134 = sphi 0, %s118
      %s142 = sphi 0, %s144
      %s145 = sphi 0, %s142
      %s146 = sphi 0, %s145
      %s162 = sphi 0, %s146
      %s166 = sphi 0, %s166
      %s168 = sphi 0, %s166
      %s169 = sphi 0, %s168
      %s183 = sphi 0, %s169
      %s187 = sphi 0, %s187
      %s189 = sphi 0, %s187
      %s190 = sphi 0, %s189
      %s204 = sphi 0, %s190
      %s208 = sphi 0, %s208
      %s210 = sphi 0, %s208
      %s211 = sphi 0, %s210
      %s225 = sphi 0, %s211
      %s229 = sphi 0, %s229
      %s231 = sphi 0, %s229
      %s232 = sphi 0, %s231
      %s246 = sphi 0, %s232
      %s250 = sphi 0, %s250
      %s252 = sphi 0, %s250
      %s253 = sphi 0, %s252
      %s267 = sphi 0, %s253
      %s271 = sphi 0, %s271
      %s273 = sphi 0, %s271
      %s274 = sphi 0, %s273
      %s288 = sphi 0, %s274
      %s296 = sphi 0, %s298
      %s299 = sphi 0, %s296
      %s300 = sphi 0, %s299
      %s316 = sphi 0, %s300
    $region4: #{tpu_custom_call.1} parent=1 // loop_header_branch
      %34 = sbr.rel (%p32) target = $region8
    $region5: #{tpu_custom_call.1} parent=1 // loop_body
      %s36 = ssub.s32 %s31, 1
      %s37 = ssub.s32 %s31, 2
      %s47 = sadd.s32 1, %s40
      %p48 = scmp.ge.s32.totalorder %s47, 2
      %s49 = scalar_select %p48, 0, %s47
      %s50 = sadd.s32 1, %s39
      %s51 = scalar_select %p48, %s50, %s39
      %p52 = scmp.ge.s32.totalorder %s51, 2
      %s53 = scalar_select %p52, 0, %s51
      %s54 = sadd.s32 1, %s38
      %s55 = scalar_select %p52, %s54, %s38
      %p56 = scmp.ge.s32.totalorder %s55, 2
      %s57 = scalar_select %p56, 0, %s55
      %s58 = ssub.s32 %s38, %s57
      %p59 = scmp.eq.s32.totalorder %s58, 0
      %s61 = sadd.s32 %s60, 1
      %s62 = scalar_select %p59, %s60, %s61
      %p65 = pneg %p59
      %p66 = scmp.eq.s32.totalorder %s31, 7
      %p67 = por %p65, %p66
      %p68 = scmp.ne.s32.totalorder %s60, %s63
      %p69 = scmp.eq.s32.totalorder %s31, 0
      %p70 = por %p68, %p69
      %p71 = scmp.ne.s32.totalorder %s60, %s63
      %p72 = scmp.eq.s32.totalorder %s36, 7
      %p73 = por %p71, %p72
      %p74 = scmp.ne.s32.totalorder %s63, %s64
      %p75 = scmp.eq.s32.totalorder %s36, 0
      %p76 = por %p74, %p75
      %p77 = scmp.ne.s32.totalorder %s63, %s64
      %p78 = scmp.eq.s32.totalorder %s37, 7
      %p79 = por %p77, %p78
      %p81 = scmp.ne.s32.totalorder %s64, %s80
      %p82 = scmp.eq.s32.totalorder %s37, 0
      %p83 = por %p81, %p82
      %s84 = ssub.s32 %s38, %s57
      %p85 = scmp.eq.s32.totalorder %s84, 0
      %s87 = sadd.s32 %s86, 1
      %s88 = scalar_select %p85, %s86, %s87
      %p91 = pneg %p85
      %p92 = scmp.eq.s32.totalorder %s31, 7
      %p93 = por %p91, %p92
      %p94 = scmp.ne.s32.totalorder %s86, %s89
      %p95 = scmp.eq.s32.totalorder %s31, 0
      %p96 = por %p94, %p95
      %p97 = scmp.ne.s32.totalorder %s86, %s89
      %p98 = scmp.eq.s32.totalorder %s36, 7
      %p99 = por %p97, %p98
      %p100 = scmp.ne.s32.totalorder %s89, %s90
      %p101 = scmp.eq.s32.totalorder %s36, 0
      %p102 = por %p100, %p101
      %p103 = scmp.ne.s32.totalorder %s89, %s90
      %p104 = scmp.eq.s32.totalorder %s37, 7
      %p105 = por %p103, %p104
      %p107 = scmp.ne.s32.totalorder %s90, %s106
      %p108 = scmp.eq.s32.totalorder %s37, 0
      %p109 = por %p107, %p108
      %s110 = ssub.s32 %s38, %s57
      %s111 = ssub.s32 %s39, %s53
      %s112 = sor.u32 %s110, %s111
      %p113 = scmp.eq.s32.totalorder %s112, 0
      %s115 = sadd.s32 %s114, 1
      %s116 = scalar_select %p113, %s114, %s115
      %p119 = pneg %p113
      %p120 = scmp.eq.s32.totalorder %s31, 7
      %p121 = por %p119, %p120
      %p122 = scmp.ne.s32.totalorder %s114, %s117
      %p123 = scmp.eq.s32.totalorder %s31, 0
      %p124 = por %p122, %p123
      %p125 = scmp.ne.s32.totalorder %s114, %s117
      %p126 = scmp.eq.s32.totalorder %s36, 7
      %p127 = por %p125, %p126
      %p128 = scmp.ne.s32.totalorder %s117, %s118
      %p129 = scmp.eq.s32.totalorder %s36, 0
      %p130 = por %p128, %p129
      %p131 = scmp.ne.s32.totalorder %s117, %s118
      %p132 = scmp.eq.s32.totalorder %s37, 7
      %p133 = por %p131, %p132
      %p135 = scmp.ne.s32.totalorder %s118, %s134
      %p136 = scmp.eq.s32.totalorder %s37, 0
      %p137 = por %p135, %p136
      %s138 = ssub.s32 %s38, %s57
      %s139 = ssub.s32 %s40, %s49
      %s140 = sor.u32 %s138, %s139
      %p141 = scmp.eq.s32.totalorder %s140, 0
      %s143 = sadd.s32 %s142, 1
      %s144 = scalar_select %p141, %s142, %s143
      %p147 = pneg %p141
      %p148 = scmp.eq.s32.totalorder %s31, 7
      %p149 = por %p147, %p148
      %p150 = scmp.ne.s32.totalorder %s142, %s145
      %p151 = scmp.eq.s32.totalorder %s31, 0
      %p152 = por %p150, %p151
      %p153 = scmp.ne.s32.totalorder %s142, %s145
      %p154 = scmp.eq.s32.totalorder %s36, 7
      %p155 = por %p153, %p154
      %p156 = scmp.ne.s32.totalorder %s145, %s146
      %p157 = scmp.eq.s32.totalorder %s36, 0
      %p158 = por %p156, %p157
      %p159 = scmp.ne.s32.totalorder %s145, %s146
      %p160 = scmp.eq.s32.totalorder %s37, 7
      %p161 = por %p159, %p160
      %p163 = scmp.ne.s32.totalorder %s146, %s162
      %p164 = scmp.eq.s32.totalorder %s37, 0
      %p165 = por %p163, %p164
      %s167 = sadd.s32 %s166, 1
      %p170 = scmp.eq.s32.totalorder %s31, 7
      %p171 = scmp.ne.s32.totalorder %s166, %s168
      %p172 = scmp.eq.s32.totalorder %s31, 0
      %p173 = por %p171, %p172
      %p174 = scmp.ne.s32.totalorder %s166, %s168
      %p175 = scmp.eq.s32.totalorder %s36, 7
      %p176 = por %p174, %p175
      %p177 = scmp.ne.s32.totalorder %s168, %s169
      %p178 = scmp.eq.s32.totalorder %s36, 0
      %p179 = por %p177, %p178
      %p180 = scmp.ne.s32.totalorder %s168, %s169
      %p181 = scmp.eq.s32.totalorder %s37, 7
      %p182 = por %p180, %p181
      %p184 = scmp.ne.s32.totalorder %s169, %s183
      %p185 = scmp.eq.s32.totalorder %s37, 0
      %p186 = por %p184, %p185
      %s188 = sadd.s32 %s187, 1
      %p191 = scmp.eq.s32.totalorder %s31, 7
      %p192 = scmp.ne.s32.totalorder %s187, %s189
      %p193 = scmp.eq.s32.totalorder %s31, 0
      %p194 = por %p192, %p193
      %p195 = scmp.ne.s32.totalorder %s187, %s189
      %p196 = scmp.eq.s32.totalorder %s36, 7
      %p197 = por %p195, %p196
      %p198 = scmp.ne.s32.totalorder %s189, %s190
      %p199 = scmp.eq.s32.totalorder %s36, 0
      %p200 = por %p198, %p199
      %p201 = scmp.ne.s32.totalorder %s189, %s190
      %p202 = scmp.eq.s32.totalorder %s37, 7
      %p203 = por %p201, %p202
      %p205 = scmp.ne.s32.totalorder %s190, %s204
      %p206 = scmp.eq.s32.totalorder %s37, 0
      %p207 = por %p205, %p206
      %s209 = sadd.s32 %s208, 1
      %p212 = scmp.eq.s32.totalorder %s31, 7
      %p213 = scmp.ne.s32.totalorder %s208, %s210
      %p214 = scmp.eq.s32.totalorder %s31, 0
      %p215 = por %p213, %p214
      %p216 = scmp.ne.s32.totalorder %s208, %s210
      %p217 = scmp.eq.s32.totalorder %s36, 7
      %p218 = por %p216, %p217
      %p219 = scmp.ne.s32.totalorder %s210, %s211
      %p220 = scmp.eq.s32.totalorder %s36, 0
      %p221 = por %p219, %p220
      %p222 = scmp.ne.s32.totalorder %s210, %s211
      %p223 = scmp.eq.s32.totalorder %s37, 7
      %p224 = por %p222, %p223
      %p226 = scmp.ne.s32.totalorder %s211, %s225
      %p227 = scmp.eq.s32.totalorder %s37, 0
      %p228 = por %p226, %p227
      %s230 = sadd.s32 %s229, 1
      %p233 = scmp.eq.s32.totalorder %s31, 7
      %p234 = scmp.ne.s32.totalorder %s229, %s231
      %p235 = scmp.eq.s32.totalorder %s31, 0
      %p236 = por %p234, %p235
      %p237 = scmp.ne.s32.totalorder %s229, %s231
      %p238 = scmp.eq.s32.totalorder %s36, 7
      %p239 = por %p237, %p238
      %p240 = scmp.ne.s32.totalorder %s231, %s232
      %p241 = scmp.eq.s32.totalorder %s36, 0
      %p242 = por %p240, %p241
      %p243 = scmp.ne.s32.totalorder %s231, %s232
      %p244 = scmp.eq.s32.totalorder %s37, 7
      %p245 = por %p243, %p244
      %p247 = scmp.ne.s32.totalorder %s232, %s246
      %p248 = scmp.eq.s32.totalorder %s37, 0
      %p249 = por %p247, %p248
      %s251 = sadd.s32 %s250, 1
      %p254 = scmp.eq.s32.totalorder %s31, 7
      %p255 = scmp.ne.s32.totalorder %s250, %s252
      %p256 = scmp.eq.s32.totalorder %s31, 0
      %p257 = por %p255, %p256
      %p258 = scmp.ne.s32.totalorder %s250, %s252
      %p259 = scmp.eq.s32.totalorder %s36, 7
      %p260 = por %p258, %p259
      %p261 = scmp.ne.s32.totalorder %s252, %s253
      %p262 = scmp.eq.s32.totalorder %s36, 0
      %p263 = por %p261, %p262
      %p264 = scmp.ne.s32.totalorder %s252, %s253
      %p265 = scmp.eq.s32.totalorder %s37, 7
      %p266 = por %p264, %p265
      %p268 = scmp.ne.s32.totalorder %s253, %s267
      %p269 = scmp.eq.s32.totalorder %s37, 0
      %p270 = por %p268, %p269
      %s272 = sadd.s32 %s271, 1
      %p275 = scmp.eq.s32.totalorder %s31, 7
      %p276 = scmp.ne.s32.totalorder %s271, %s273
      %p277 = scmp.eq.s32.totalorder %s31, 0
      %p278 = por %p276, %p277
      %p279 = scmp.ne.s32.totalorder %s271, %s273
      %p280 = scmp.eq.s32.totalorder %s36, 7
      %p281 = por %p279, %p280
      %p282 = scmp.ne.s32.totalorder %s273, %s274
      %p283 = scmp.eq.s32.totalorder %s36, 0
      %p284 = por %p282, %p283
      %p285 = scmp.ne.s32.totalorder %s273, %s274
      %p286 = scmp.eq.s32.totalorder %s37, 7
      %p287 = por %p285, %p286
      %p289 = scmp.ne.s32.totalorder %s274, %s288
      %p290 = scmp.eq.s32.totalorder %s37, 0
      %p291 = por %p289, %p290
      %s292 = ssub.s32 %s38, %s57
      %s293 = ssub.s32 %s39, %s53
      %s294 = sor.u32 %s292, %s293
      %p295 = scmp.eq.s32.totalorder %s294, 0
      %s297 = sadd.s32 %s296, 1
      %s298 = scalar_select %p295, %s296, %s297
      %p301 = pneg %p295
      %p302 = scmp.eq.s32.totalorder %s31, 7
      %p303 = por %p301, %p302
      %p304 = scmp.ne.s32.totalorder %s296, %s299
      %p305 = scmp.eq.s32.totalorder %s31, 0
      %p306 = por %p304, %p305
      %p307 = scmp.ne.s32.totalorder %s296, %s299
      %p308 = scmp.eq.s32.totalorder %s36, 7
      %p309 = por %p307, %p308
      %p310 = scmp.ne.s32.totalorder %s299, %s300
      %p311 = scmp.eq.s32.totalorder %s36, 0
      %p312 = por %p310, %p311
      %p313 = scmp.ne.s32.totalorder %s299, %s300
      %p314 = scmp.eq.s32.totalorder %s37, 7
      %p315 = por %p313, %p314
      %p317 = scmp.ne.s32.totalorder %s300, %s316
      %p318 = scmp.eq.s32.totalorder %s37, 0
      %p319 = por %p317, %p318
      %p320 = scmp.le.s32.totalorder 1, %s31
      %p321 = scmp.lt.s32.totalorder %s31, 9
      %p322 = pnand %p320, %p321
      %p323 = pneg %p322
      // Predicated region
      $region9: #{tpu_custom_call.1} parent=5 // pred_check
        _
      $region10: #{tpu_custom_call.1} parent=5 // pred_check_branch
        %325 = sbr.rel (%p322) target = $region12
      $region11: #{tpu_custom_call.1} parent=5 // pred_region
        %s326 = ssub.s32 %s31, 1
        // Predicated region
        $region13: #{tpu_custom_call.1} parent=11 // pred_check
          %p327 = pneg %p179
        $region14: #{tpu_custom_call.1} parent=11 // pred_check_branch
          %329 = sbr.rel (%p327) target = $region16
        $region15: #{tpu_custom_call.1} parent=11 // pred_region
          %s331 = ssub.s32 1024, 1024
          %332 = vsyncadd [#allocation13], %s331
          %s333 = sshll.u32 [#allocation14], 4
          %s334 = int_to_ptr.vmem [resolvable:$true] %s333
          %339 = dma.hbm_to_vmem [thread:$0]  %s4, 1024, %s334, [#allocation13], 64, 64, 4
        $region16: #{tpu_custom_call.1} parent=11 // pred_fallthru
          _
        // Predicated region
        $region17: #{tpu_custom_call.1} parent=11 // pred_check
          %p340 = pneg %p200
        $region18: #{tpu_custom_call.1} parent=11 // pred_check_branch
          %342 = sbr.rel (%p340) target = $region20
        $region19: #{tpu_custom_call.1} parent=11 // pred_region
          %s344 = ssub.s32 16, 16
          %345 = vsyncadd [#allocation16], %s344
          %s347 = sshll.u32 [#allocation15], 4
          %s348 = int_to_ptr.vmem [resolvable:$true] %s347
          %350 = dma.hbm_to_vmem [thread:$0]  %s5, 16, %s348, [#allocation16]
        $region20: #{tpu_custom_call.1} parent=11 // pred_fallthru
          _
        // Predicated region
        $region21: #{tpu_custom_call.1} parent=11 // pred_check
          %p351 = pneg %p221
        $region22: #{tpu_custom_call.1} parent=11 // pred_check_branch
          %353 = sbr.rel (%p351) target = $region24
        $region23: #{tpu_custom_call.1} parent=11 // pred_region
          %s355 = ssub.s32 2048, 2048
          %356 = vsyncadd [#allocation16], %s355
          %s357 = sshll.u32 [#allocation17], 4
          %s358 = int_to_ptr.vmem [resolvable:$true] %s357
          %363 = dma.hbm_to_vmem [thread:$0]  %s6, 2048, %s358, [#allocation16], 128, 128, 8
        $region24: #{tpu_custom_call.1} parent=11 // pred_fallthru
          _
        // Predicated region
        $region25: #{tpu_custom_call.1} parent=11 // pred_check
          %p364 = pneg %p242
        $region26: #{tpu_custom_call.1} parent=11 // pred_check_branch
          %366 = sbr.rel (%p364) target = $region28
        $region27: #{tpu_custom_call.1} parent=11 // pred_region
          %s368 = ssub.s32 32, 32
          %369 = vsyncadd [#allocation19], %s368
          %s371 = sshll.u32 [#allocation18], 4
          %s372 = int_to_ptr.vmem [resolvable:$true] %s371
          %374 = dma.hbm_to_vmem [thread:$0]  %s7, 32, %s372, [#allocation19]
        $region28: #{tpu_custom_call.1} parent=11 // pred_fallthru
          _
        // Predicated region
        $region29: #{tpu_custom_call.1} parent=11 // pred_check
          %p375 = pneg %p263
        $region30: #{tpu_custom_call.1} parent=11 // pred_check_branch
          %377 = sbr.rel (%p375) target = $region32
        $region31: #{tpu_custom_call.1} parent=11 // pred_region
          %s379 = ssub.s32 1024, 1024
          %380 = vsyncadd [#allocation19], %s379
          %s381 = sshll.u32 [#allocation20], 4
          %s382 = int_to_ptr.vmem [resolvable:$true] %s381
          %387 = dma.hbm_to_vmem [thread:$0]  %s8, 1024, %s382, [#allocation19], 64, 64, 4
        $region32: #{tpu_custom_call.1} parent=11 // pred_fallthru
          _
        // Predicated region
        $region33: #{tpu_custom_call.1} parent=11 // pred_check
          %p388 = pneg %p284
        $region34: #{tpu_custom_call.1} parent=11 // pred_check_branch
          %390 = sbr.rel (%p388) target = $region36
        $region35: #{tpu_custom_call.1} parent=11 // pred_region
          %s392 = ssub.s32 16, 16
          %393 = vsyncadd [#allocation22], %s392
          %s395 = sshll.u32 [#allocation21], 4
          %s396 = int_to_ptr.vmem [resolvable:$true] %s395
          %398 = dma.hbm_to_vmem [thread:$0]  %s9, 16, %s396, [#allocation22]
        $region36: #{tpu_custom_call.1} parent=11 // pred_fallthru
          _
      $region12: #{tpu_custom_call.1} parent=5 // pred_fallthru
        _
      %p399 = scmp.lt.s32.totalorder %s31, 8
      // Predicated region
      $region37: #{tpu_custom_call.1} parent=5 // pred_check
        %p400 = pneg %p399
      $region38: #{tpu_custom_call.1} parent=5 // pred_check_branch
        %402 = sbr.rel (%p400) target = $region40
      $region39: #{tpu_custom_call.1} parent=5 // pred_region
        // Predicated region
        $region41: #{tpu_custom_call.1} parent=39 // pred_check
          %p403 = pneg %p70
        $region42: #{tpu_custom_call.1} parent=39 // pred_check_branch
          %405 = sbr.rel (%p403) target = $region44
        $region43: #{tpu_custom_call.1} parent=39 // pred_region
          %s406 = sand.u32 %s60, 1
          %s407 = scalar_lea.sflag [#allocation7], %s406
          %s408 = sand.u32 %s60, 1
          %s409 = scalar_lea.vmem [#allocation6], %s408
          %s411 = ssub.s32 16, 16
          %412 = vsyncadd %s407, %s411
          %s413 = smul.addr %s38, 16
          %s414 = scalar_lea.hbm %s0, %s413
          %s416 = sshll.u32 %s409, 4
          %s417 = int_to_ptr.vmem [resolvable:$true] %s416
          %419 = dma.hbm_to_vmem [thread:$0]  %s414, 16, %s417, %s407
        $region44: #{tpu_custom_call.1} parent=39 // pred_fallthru
          _
        // Predicated region
        $region45: #{tpu_custom_call.1} parent=39 // pred_check
          %p420 = pneg %p96
        $region46: #{tpu_custom_call.1} parent=39 // pred_check_branch
          %422 = sbr.rel (%p420) target = $region48
        $region47: #{tpu_custom_call.1} parent=39 // pred_region
          %s423 = sand.u32 %s31, 1
          %s424 = scalar_lea.sflag [#allocation10], %s423
          %s425 = sand.u32 %s86, 1
          %s426 = scalar_lea.vmem [#allocation9], %s425
          %s428 = ssub.s32 16, 16
          %429 = vsyncadd %s424, %s428
          %s430 = smul.addr %s38, 16
          %s431 = scalar_lea.hbm %s1, %s430
          %s433 = sshll.u32 %s426, 4
          %s434 = int_to_ptr.vmem [resolvable:$true] %s433
          %436 = dma.hbm_to_vmem [thread:$0]  %s431, 16, %s434, %s424
        $region48: #{tpu_custom_call.1} parent=39 // pred_fallthru
          _
        // Predicated region
        $region49: #{tpu_custom_call.1} parent=39 // pred_check
          %p437 = pneg %p124
        $region50: #{tpu_custom_call.1} parent=39 // pred_check_branch
          %439 = sbr.rel (%p437) target = $region52
        $region51: #{tpu_custom_call.1} parent=39 // pred_region
          %s440 = sand.u32 %s31, 1
          %s441 = scalar_lea.sflag [#allocation10], %s440
          %s442 = sand.u32 %s114, 1
          %s443 = smul.addr %s442, 128
          %s444 = scalar_lea.vmem [#allocation11], %s443
          %s445 = smul.u32 16, %s39
          %s447 = ssub.s32 2048, 2048
          %448 = vsyncadd %s441, %s447
          %s449 = smul.addr %s38, 32
          %s450 = sadd.s32 %s445, %s449
          %s451 = smul.addr %s450, 128
          %s452 = scalar_lea.hbm %s2, %s451
          %s453 = sshll.u32 %s444, 4
          %s454 = int_to_ptr.vmem [resolvable:$true] %s453
          %459 = dma.hbm_to_vmem [thread:$0]  %s452, 2048, %s454, %s441, 128, 128, 8
        $region52: #{tpu_custom_call.1} parent=39 // pred_fallthru
          _
        // Predicated region
        $region53: #{tpu_custom_call.1} parent=39 // pred_check
          %p460 = pneg %p152
        $region54: #{tpu_custom_call.1} parent=39 // pred_check_branch
          %462 = sbr.rel (%p460) target = $region56
        $region55: #{tpu_custom_call.1} parent=39 // pred_region
          %s463 = sand.u32 %s31, 1
          %s464 = scalar_lea.sflag [#allocation13], %s463
          %s465 = sand.u32 %s142, 1
          %s466 = smul.addr %s465, 128
          %s467 = scalar_lea.vmem [#allocation12], %s466
          %s468 = smul.u32 16, %s40
          %s470 = ssub.s32 2048, 2048
          %471 = vsyncadd %s464, %s470
          %s472 = smul.addr %s38, 32
          %s473 = sadd.s32 %s468, %s472
          %s474 = smul.addr %s473, 128
          %s475 = scalar_lea.hbm %s3, %s474
          %s476 = sshll.u32 %s467, 4
          %s477 = int_to_ptr.vmem [resolvable:$true] %s476
          %482 = dma.hbm_to_vmem [thread:$0]  %s475, 2048, %s477, %s464, 128, 128, 8
        $region56: #{tpu_custom_call.1} parent=39 // pred_fallthru
          _
      $region40: #{tpu_custom_call.1} parent=5 // pred_fallthru
        _
      %p483 = scmp.le.s32.totalorder 1, %s31
      %p484 = scmp.lt.s32.totalorder %s31, 9
      %p485 = pnand %p483, %p484
      %p486 = pneg %p485
      // Predicated region
      $region57: #{tpu_custom_call.1} parent=5 // pred_check
        _
      $region58: #{tpu_custom_call.1} parent=5 // pred_check_branch
        %488 = sbr.rel (%p485) target = $region60
      $region59: #{tpu_custom_call.1} parent=5 // pred_region
        %s489 = ssub.s32 %s31, 1
        %s490 = sand.u32 %s63, 1
        %s491 = scalar_lea.sflag [#allocation7], %s490
        %s492 = sand.u32 %s63, 1
        %s493 = scalar_lea.vmem [#allocation6], %s492
        // Predicated region
        $region61: #{tpu_custom_call.1} parent=59 // pred_check
          %p494 = pneg %p76
        $region62: #{tpu_custom_call.1} parent=59 // pred_check_branch
          %496 = sbr.rel (%p494) target = $region64
        $region63: #{tpu_custom_call.1} parent=59 // pred_region
          %497 = dma.done %s491, 16
        $region64: #{tpu_custom_call.1} parent=59 // pred_fallthru
          _
        %s498 = sand.u32 %s36, 1
        %s499 = scalar_lea.sflag [#allocation10], %s498
        %s500 = sand.u32 %s89, 1
        %s501 = scalar_lea.vmem [#allocation9], %s500
        // Predicated region
        $region65: #{tpu_custom_call.1} parent=59 // pred_check
          %p502 = pneg %p102
        $region66: #{tpu_custom_call.1} parent=59 // pred_check_branch
          %504 = sbr.rel (%p502) target = $region68
        $region67: #{tpu_custom_call.1} parent=59 // pred_region
          %505 = dma.done %s499, 16
        $region68: #{tpu_custom_call.1} parent=59 // pred_fallthru
          _
        %s506 = sand.u32 %s36, 1
        %s507 = scalar_lea.sflag [#allocation10], %s506
        %s508 = sand.u32 %s117, 1
        %s509 = smul.addr %s508, 128
        %s510 = scalar_lea.vmem [#allocation11], %s509
        // Predicated region
        $region69: #{tpu_custom_call.1} parent=59 // pred_check
          %p511 = pneg %p130
        $region70: #{tpu_custom_call.1} parent=59 // pred_check_branch
          %513 = sbr.rel (%p511) target = $region72
        $region71: #{tpu_custom_call.1} parent=59 // pred_region
          %514 = dma.done %s507, 2048
        $region72: #{tpu_custom_call.1} parent=59 // pred_fallthru
          _
        %s515 = sand.u32 %s36, 1
        %s516 = scalar_lea.sflag [#allocation13], %s515
        %s517 = sand.u32 %s145, 1
        %s518 = smul.addr %s517, 128
        %s519 = scalar_lea.vmem [#allocation12], %s518
        // Predicated region
        $region73: #{tpu_custom_call.1} parent=59 // pred_check
          %p520 = pneg %p158
        $region74: #{tpu_custom_call.1} parent=59 // pred_check_branch
          %522 = sbr.rel (%p520) target = $region76
        $region75: #{tpu_custom_call.1} parent=59 // pred_region
          %523 = dma.done %s516, 2048
        $region76: #{tpu_custom_call.1} parent=59 // pred_fallthru
          _
        // Predicated region
        $region77: #{tpu_custom_call.1} parent=59 // pred_check
          %p524 = pneg %p179
        $region78: #{tpu_custom_call.1} parent=59 // pred_check_branch
          %526 = sbr.rel (%p524) target = $region80
        $region79: #{tpu_custom_call.1} parent=59 // pred_region
          %527 = dma.done [#allocation13], 1024
        $region80: #{tpu_custom_call.1} parent=59 // pred_fallthru
          _
        // Predicated region
        $region81: #{tpu_custom_call.1} parent=59 // pred_check
          %p528 = pneg %p200
        $region82: #{tpu_custom_call.1} parent=59 // pred_check_branch
          %530 = sbr.rel (%p528) target = $region84
        $region83: #{tpu_custom_call.1} parent=59 // pred_region
          %531 = dma.done [#allocation16], 16
        $region84: #{tpu_custom_call.1} parent=59 // pred_fallthru
          _
        // Predicated region
        $region85: #{tpu_custom_call.1} parent=59 // pred_check
          %p532 = pneg %p221
        $region86: #{tpu_custom_call.1} parent=59 // pred_check_branch
          %534 = sbr.rel (%p532) target = $region88
        $region87: #{tpu_custom_call.1} parent=59 // pred_region
          %535 = dma.done [#allocation16], 2048
        $region88: #{tpu_custom_call.1} parent=59 // pred_fallthru
          _
        // Predicated region
        $region89: #{tpu_custom_call.1} parent=59 // pred_check
          %p536 = pneg %p242
        $region90: #{tpu_custom_call.1} parent=59 // pred_check_branch
          %538 = sbr.rel (%p536) target = $region92
        $region91: #{tpu_custom_call.1} parent=59 // pred_region
          %539 = dma.done [#allocation19], 32
        $region92: #{tpu_custom_call.1} parent=59 // pred_fallthru
          _
        // Predicated region
        $region93: #{tpu_custom_call.1} parent=59 // pred_check
          %p540 = pneg %p263
        $region94: #{tpu_custom_call.1} parent=59 // pred_check_branch
          %542 = sbr.rel (%p540) target = $region96
        $region95: #{tpu_custom_call.1} parent=59 // pred_region
          %543 = dma.done [#allocation19], 1024
        $region96: #{tpu_custom_call.1} parent=59 // pred_fallthru
          _
        // Predicated region
        $region97: #{tpu_custom_call.1} parent=59 // pred_check
          %p544 = pneg %p284
        $region98: #{tpu_custom_call.1} parent=59 // pred_check_branch
          %546 = sbr.rel (%p544) target = $region100
        $region99: #{tpu_custom_call.1} parent=59 // pred_region
          %547 = dma.done [#allocation22], 16
        $region100: #{tpu_custom_call.1} parent=59 // pred_fallthru
          _
        %s548 = sand.u32 %s63, 1
        %s549 = scalar_lea.sflag [#allocation7], %s548
        %s550 = sand.u32 %s63, 1
        %s551 = scalar_lea.vmem [#allocation6], %s550
        %p552 = pneg %p76
        %p553 = pneg %p73
        %s554 = sand.u32 %s36, 1
        %s555 = scalar_lea.sflag [#allocation10], %s554
        %s556 = sand.u32 %s89, 1
        %s557 = scalar_lea.vmem [#allocation9], %s556
        %p558 = pneg %p102
        %p559 = pneg %p99
        %s560 = sand.u32 %s36, 1
        %s561 = scalar_lea.sflag [#allocation10], %s560
        %s562 = sand.u32 %s117, 1
        %s563 = smul.addr %s562, 128
        %s564 = scalar_lea.vmem [#allocation11], %s563
        %p565 = pneg %p130
        %p566 = pneg %p127
        %s567 = sand.u32 %s36, 1
        %s568 = scalar_lea.sflag [#allocation13], %s567
        %s569 = sand.u32 %s145, 1
        %s570 = smul.addr %s569, 128
        %s571 = scalar_lea.vmem [#allocation12], %s570
        %p572 = pneg %p158
        %p573 = pneg %p155
        %p574 = pneg %p179
        %p575 = pneg %p176
        %p576 = pneg %p200
        %p577 = pneg %p197
        %p578 = pneg %p221
        %p579 = pneg %p218
        %p580 = pneg %p242
        %p581 = pneg %p239
        %p582 = pneg %p263
        %p583 = pneg %p260
        %p584 = pneg %p284
        %p585 = pneg %p281
        %p586 = pneg %p312
        %p587 = pneg %p309
        %s588 = sand.u32 %s299, 1
        %s589 = scalar_lea.sflag [#allocation8], %s588
        %s590 = sand.u32 %s299, 1
        %s591 = smul.addr %s590, 128
        %s592 = scalar_lea.vmem [#allocation23], %s591
        %s593 = smul.u32 16, %s42
        %s594 = smul.u32 16, %s43
        %s595 = smul.u32 16, %s42
        %p597 = scmp.eq.s32.totalorder %s43, 0
        // Predicated region
        $region101: #{tpu_custom_call.1} parent=59 // pred_check
          %p598 = pneg %p597
        $region102: #{tpu_custom_call.1} parent=59 // pred_check_branch
          %600 = sbr.rel (%p598) target = $region104
        $region103: #{tpu_custom_call.1} parent=59 // pred_region
          %v601 = vld [vmem:[%s510] sm:$0xff]
          %v602 = vld [vmem:[%s510 + $0x8] sm:$0xff]
          %v603 = vld [vmem:[%s510 + $0x10] sm:$0xff]
          %v604 = vld [vmem:[%s510 + $0x18] sm:$0xff]
          %v605 = vld [vmem:[%s510 + $0x20] sm:$0xff]
          %v606 = vld [vmem:[%s510 + $0x28] sm:$0xff]
          %v607 = vld [vmem:[%s510 + $0x30] sm:$0xff]
          %v608 = vld [vmem:[%s510 + $0x38] sm:$0xff]
          %v609 = vld [vmem:[%s510 + $0x40] sm:$0xff]
          %v610 = vld [vmem:[%s510 + $0x48] sm:$0xff]
          %v611 = vld [vmem:[%s510 + $0x50] sm:$0xff]
          %v612 = vld [vmem:[%s510 + $0x58] sm:$0xff]
          %v613 = vld [vmem:[%s510 + $0x60] sm:$0xff]
          %v614 = vld [vmem:[%s510 + $0x68] sm:$0xff]
          %v615 = vld [vmem:[%s510 + $0x70] sm:$0xff]
          %v616 = vld [vmem:[%s510 + $0x78] sm:$0xff]
          %v617 = vld [vmem:[%s493] sm:$0x1]
          %v619 = vlaneseq
          %v620 = vshrl.u32 %v619, 7
          %v621 = vsub.s32 0, %v620
          %v622 = vrot.slane %v617, %v621
          %v624 = vmul.f32 %v601, %v622
          %v625 = vmul.f32 %v602, %v622
          %v626 = vmul.f32 %v603, %v622
          %v627 = vmul.f32 %v604, %v622
          %v628 = vmul.f32 %v605, %v622
          %v629 = vmul.f32 %v606, %v622
          %v630 = vmul.f32 %v607, %v622
          %v631 = vmul.f32 %v608, %v622
          %v632 = vmul.f32 %v609, %v622
          %v633 = vmul.f32 %v610, %v622
          %v634 = vmul.f32 %v611, %v622
          %v635 = vmul.f32 %v612, %v622
          %v636 = vmul.f32 %v613, %v622
          %v637 = vmul.f32 %v614, %v622
          %v638 = vmul.f32 %v615, %v622
          %v639 = vmul.f32 %v616, %v622
          %v640 = vld [vmem:[%s501] sm:$0x1]
          %v642 = vlaneseq
          %v643 = vshrl.u32 %v642, 7
          %v644 = vsub.s32 0, %v643
          %v645 = vrot.slane %v640, %v644
          %v647 = vadd.f32 %v624, %v645
          %v648 = vadd.f32 %v625, %v645
          %v649 = vadd.f32 %v626, %v645
          %v650 = vadd.f32 %v627, %v645
          %v651 = vadd.f32 %v628, %v645
          %v652 = vadd.f32 %v629, %v645
          %v653 = vadd.f32 %v630, %v645
          %v654 = vadd.f32 %v631, %v645
          %v655 = vadd.f32 %v632, %v645
          %v656 = vadd.f32 %v633, %v645
          %v657 = vadd.f32 %v634, %v645
          %v658 = vadd.f32 %v635, %v645
          %v659 = vadd.f32 %v636, %v645
          %v660 = vadd.f32 %v637, %v645
          %v661 = vadd.f32 %v638, %v645
          %v662 = vadd.f32 %v639, %v645
          %v663 = vpack.c.bf16 %v648, %v647
          %v664 = vpack.c.bf16 %v650, %v649
          %v665 = vpack.c.bf16 %v652, %v651
          %v666 = vpack.c.bf16 %v654, %v653
          %v667 = vpack.c.bf16 %v656, %v655
          %v668 = vpack.c.bf16 %v658, %v657
          %v669 = vpack.c.bf16 %v660, %v659
          %v670 = vpack.c.bf16 %v662, %v661
          %v671 = vld [vmem:[#allocation14] sm:$0xf]
          %v672 = vld [vmem:[#allocation14 + $0x4] sm:$0xf]
          %v673 = vld [vmem:[#allocation14 + $0x8] sm:$0xf]
          %v674 = vld [vmem:[#allocation14 + $0xc] sm:$0xf]
          %v675 = vld [vmem:[#allocation14 + $0x10] sm:$0xf]
          %v676 = vld [vmem:[#allocation14 + $0x14] sm:$0xf]
          %v677 = vld [vmem:[#allocation14 + $0x18] sm:$0xf]
          %v678 = vld [vmem:[#allocation14 + $0x1c] sm:$0xf]
          %v679 = vld [vmem:[#allocation14 + $0x20] sm:$0xf]
          %v680 = vld [vmem:[#allocation14 + $0x24] sm:$0xf]
          %v681 = vld [vmem:[#allocation14 + $0x28] sm:$0xf]
          %v682 = vld [vmem:[#allocation14 + $0x2c] sm:$0xf]
          %v683 = vld [vmem:[#allocation14 + $0x30] sm:$0xf]
          %v684 = vld [vmem:[#allocation14 + $0x34] sm:$0xf]
          %v685 = vld [vmem:[#allocation14 + $0x38] sm:$0xf]
          %v686 = vld [vmem:[#allocation14 + $0x3c] sm:$0xf]
          %v687 = vld [vmem:[#allocation15] sm:$0x1]
          %v689 = vlaneseq
          %v690 = vshrl.u32 %v689, 7
          %v691 = vsub.s32 0, %v690
          %v692 = vrot.slane %v687, %v691
          %v710 = vunpack.c.l.b16 %v671
          %v711 = vunpack.c.l.b16 %v672
          %v712 = vunpack.c.l.b16 %v673
          %v713 = vunpack.c.l.b16 %v674
          %v714 = vunpack.c.l.b16 %v675
          %v715 = vunpack.c.l.b16 %v676
          %v716 = vunpack.c.l.b16 %v677
          %v717 = vunpack.c.l.b16 %v678
          %v718 = vunpack.c.l.b16 %v679
          %v719 = vunpack.c.l.b16 %v680
          %v720 = vunpack.c.l.b16 %v681
          %v721 = vunpack.c.l.b16 %v682
          %v722 = vunpack.c.l.b16 %v683
          %v723 = vunpack.c.l.b16 %v684
          %v724 = vunpack.c.l.b16 %v685
          %v725 = vunpack.c.l.b16 %v686
          %v726 = vpack.c.b16 %v711, %v710
          %v727 = vpack.c.b16 %v713, %v712
          %v728 = vpack.c.b16 %v715, %v714
          %v729 = vpack.c.b16 %v717, %v716
          %v730 = vpack.c.b16 %v719, %v718
          %v731 = vpack.c.b16 %v721, %v720
          %v732 = vpack.c.b16 %v723, %v722
          %v733 = vpack.c.b16 %v725, %v724
          %742 = vmatprep.subr.bf16.mxu0 0
          %743 = vmatpush1.bf16.msra.mxu0 %v726
          %744 = vmatprep.subr.bf16.mxu0 0
          %745 = vmatpush1.bf16.msra.mxu0 %v727
          %746 = vmatprep.subr.bf16.mxu0 0
          %747 = vmatpush1.bf16.msra.mxu0 %v728
          %748 = vmatprep.subr.bf16.mxu0 0
          %749 = vmatpush1.bf16.msra.mxu0 %v729
          %750 = vmatprep.subr.bf16.mxu0 0
          %751 = vmatpush1.bf16.msra.mxu0 %v730
          %752 = vmatprep.subr.bf16.mxu0 0
          %753 = vmatpush1.bf16.msra.mxu0 %v731
          %754 = vmatprep.subr.bf16.mxu0 0
          %755 = vmatpush1.bf16.msra.mxu0 %v732
          %756 = vmatprep.subr.bf16.mxu0 0
          %757 = vmatpush1.bf16.msra.mxu0 %v733
          %758 = vmatprep.subr.bf16.mxu0 0
          %759 = vmatpush1.bf16.msra.mxu0 0
          %760 = vmatprep.subr.bf16.mxu0 0
          %761 = vmatpush1.bf16.msra.mxu0 0
          %762 = vmatprep.subr.bf16.mxu0 0
          %763 = vmatpush1.bf16.msra.mxu0 0
          %764 = vmatprep.subr.bf16.mxu0 0
          %765 = vmatpush1.bf16.msra.mxu0 0
          %766 = vmatprep.subr.bf16.mxu0 0
          %767 = vmatpush1.bf16.msra.mxu0 0
          %768 = vmatprep.subr.bf16.mxu0 0
          %769 = vmatpush1.bf16.msra.mxu0 0
          %770 = vmatprep.subr.bf16.mxu0 0
          %771 = vmatpush1.bf16.msra.mxu0 0
          %772 = vmatprep.subr.bf16.mxu0 0
          %773 = vmatpush1.bf16.msra.mxu0 0
          %774 = vmatprep.mubr.bf16.mxu0 0
          %775 = vmatmul.mubr.bf16.gmra.mrb[0].mxu0 %v663
          %v776 = vpop.f32.mrb[0].mxu0
          %v777 = vadd.f32 %v692, %v776
          %v778 = vpop.f32.mrb[0].mxu0
          %v779 = vpop.f32.mrb[0].mxu0
          %v780 = vadd.f32 %v692, %v779
          %v781 = vpop.f32.mrb[0].mxu0
          %782 = vmatprep.mubr.bf16.mxu0 0
          %783 = vmatmul.mubr.bf16.gmra.mrb[0].mxu0 %v664
          %v784 = vpop.f32.mrb[0].mxu0
          %v785 = vadd.f32 %v692, %v784
          %v786 = vpop.f32.mrb[0].mxu0
          %v787 = vpop.f32.mrb[0].mxu0
          %v788 = vadd.f32 %v692, %v787
          %v789 = vpop.f32.mrb[0].mxu0
          %790 = vmatprep.mubr.bf16.mxu0 0
          %791 = vmatmul.mubr.bf16.gmra.mrb[0].mxu0 %v665
          %v792 = vpop.f32.mrb[0].mxu0
          %v793 = vadd.f32 %v692, %v792
          %v794 = vpop.f32.mrb[0].mxu0
          %v795 = vpop.f32.mrb[0].mxu0
          %v796 = vadd.f32 %v692, %v795
          %v797 = vpop.f32.mrb[0].mxu0
          %798 = vmatprep.mubr.bf16.mxu0 0
          %799 = vmatmul.mubr.bf16.gmra.mrb[0].mxu0 %v666
          %v800 = vpop.f32.mrb[0].mxu0
          %v801 = vadd.f32 %v692, %v800
          %v802 = vpop.f32.mrb[0].mxu0
          %v803 = vpop.f32.mrb[0].mxu0
          %v804 = vadd.f32 %v692, %v803
          %v805 = vpop.f32.mrb[0].mxu0
          %806 = vmatprep.mubr.bf16.mxu0 0
          %807 = vmatmul.mubr.bf16.gmra.mrb[0].mxu0 %v667
          %v808 = vpop.f32.mrb[0].mxu0
          %v809 = vadd.f32 %v692, %v808
          %v810 = vpop.f32.mrb[0].mxu0
          %v811 = vpop.f32.mrb[0].mxu0
          %v812 = vadd.f32 %v692, %v811
          %v813 = vpop.f32.mrb[0].mxu0
          %814 = vmatprep.mubr.bf16.mxu0 0
          %815 = vmatmul.mubr.bf16.gmra.mrb[0].mxu0 %v668
          %v816 = vpop.f32.mrb[0].mxu0
          %v817 = vadd.f32 %v692, %v816
          %v818 = vpop.f32.mrb[0].mxu0
          %v819 = vpop.f32.mrb[0].mxu0
          %v820 = vadd.f32 %v692, %v819
          %v821 = vpop.f32.mrb[0].mxu0
          %822 = vmatprep.mubr.bf16.mxu0 0
          %823 = vmatmul.mubr.bf16.gmra.mrb[0].mxu0 %v669
          %v824 = vpop.f32.mrb[0].mxu0
          %v825 = vadd.f32 %v692, %v824
          %v826 = vpop.f32.mrb[0].mxu0
          %v827 = vpop.f32.mrb[0].mxu0
          %v828 = vadd.f32 %v692, %v827
          %v829 = vpop.f32.mrb[0].mxu0
          %830 = vmatprep.mubr.bf16.mxu0 0
          %831 = vmatmul.mubr.bf16.gmra.mrb[0].mxu0 %v670
          %v832 = vpop.f32.mrb[0].mxu0
          %v833 = vadd.f32 %v692, %v832
          %v834 = vpop.f32.mrb[0].mxu0
          %v835 = vpop.f32.mrb[0].mxu0
          %v836 = vadd.f32 %v692, %v835
          %v837 = vpop.f32.mrb[0].mxu0
          %838 = vdwg.mxu0
          %v839 = vpack.c.bf16 %v780, %v777
          %v840 = vpack.c.bf16 %v788, %v785
          %v841 = vpack.c.bf16 %v796, %v793
          %v842 = vpack.c.bf16 %v804, %v801
          %v843 = vpack.c.bf16 %v812, %v809
          %v844 = vpack.c.bf16 %v820, %v817
          %v845 = vpack.c.bf16 %v828, %v825
          %v846 = vpack.c.bf16 %v836, %v833
          %847 = vst [vmem:[#allocation2] sm:$0xff] %v839
          %848 = vst [vmem:[#allocation2 + $0x8] sm:$0xff] %v840
          %849 = vst [vmem:[#allocation2 + $0x10] sm:$0xff] %v841
          %850 = vst [vmem:[#allocation2 + $0x18] sm:$0xff] %v842
          %851 = vst [vmem:[#allocation2 + $0x20] sm:$0xff] %v843
          %852 = vst [vmem:[#allocation2 + $0x28] sm:$0xff] %v844
          %853 = vst [vmem:[#allocation2 + $0x30] sm:$0xff] %v845
          %854 = vst [vmem:[#allocation2 + $0x38] sm:$0xff] %v846
          %vm855 = vcmask 7168
          %856 = vst.msk [vmem:[#allocation3] sm:$0xff] %vm855, -inf
          %857 = vst.msk [vmem:[#allocation3 + $0x8] sm:$0xff] %vm855, -inf
          %858 = vst.msk [vmem:[#allocation3 + $0x10] sm:$0xff] %vm855, -inf
          %859 = vst.msk [vmem:[#allocation3 + $0x18] sm:$0xff] %vm855, -inf
          %860 = vst.msk [vmem:[#allocation3 + $0x20] sm:$0xff] %vm855, -inf
          %861 = vst.msk [vmem:[#allocation3 + $0x28] sm:$0xff] %vm855, -inf
          %862 = vst.msk [vmem:[#allocation3 + $0x30] sm:$0xff] %vm855, -inf
          %863 = vst.msk [vmem:[#allocation3 + $0x38] sm:$0xff] %vm855, -inf
          %864 = vst.msk [vmem:[#allocation3 + $0x40] sm:$0xff] %vm855, -inf
          %865 = vst.msk [vmem:[#allocation3 + $0x48] sm:$0xff] %vm855, -inf
          %866 = vst.msk [vmem:[#allocation3 + $0x50] sm:$0xff] %vm855, -inf
          %867 = vst.msk [vmem:[#allocation3 + $0x58] sm:$0xff] %vm855, -inf
          %868 = vst.msk [vmem:[#allocation3 + $0x60] sm:$0xff] %vm855, -inf
          %869 = vst.msk [vmem:[#allocation3 + $0x68] sm:$0xff] %vm855, -inf
          %870 = vst.msk [vmem:[#allocation3 + $0x70] sm:$0xff] %vm855, -inf
          %871 = vst.msk [vmem:[#allocation3 + $0x78] sm:$0xff] %vm855, -inf
          %872 = vst.msk [vmem:[#allocation4] sm:$0xff] %vm855, 0.0
          %873 = vst.msk [vmem:[#allocation4 + $0x8] sm:$0xff] %vm855, 0.0
          %874 = vst.msk [vmem:[#allocation4 + $0x10] sm:$0xff] %vm855, 0.0
          %875 = vst.msk [vmem:[#allocation4 + $0x18] sm:$0xff] %vm855, 0.0
          %876 = vst.msk [vmem:[#allocation4 + $0x20] sm:$0xff] %vm855, 0.0
          %877 = vst.msk [vmem:[#allocation4 + $0x28] sm:$0xff] %vm855, 0.0
          %878 = vst.msk [vmem:[#allocation4 + $0x30] sm:$0xff] %vm855, 0.0
          %879 = vst.msk [vmem:[#allocation4 + $0x38] sm:$0xff] %vm855, 0.0
          %880 = vst.msk [vmem:[#allocation4 + $0x40] sm:$0xff] %vm855, 0.0
          %881 = vst.msk [vmem:[#allocation4 + $0x48] sm:$0xff] %vm855, 0.0
          %882 = vst.msk [vmem:[#allocation4 + $0x50] sm:$0xff] %vm855, 0.0
          %883 = vst.msk [vmem:[#allocation4 + $0x58] sm:$0xff] %vm855, 0.0
          %884 = vst.msk [vmem:[#allocation4 + $0x60] sm:$0xff] %vm855, 0.0
          %885 = vst.msk [vmem:[#allocation4 + $0x68] sm:$0xff] %vm855, 0.0
          %886 = vst.msk [vmem:[#allocation4 + $0x70] sm:$0xff] %vm855, 0.0
          %887 = vst.msk [vmem:[#allocation4 + $0x78] sm:$0xff] %vm855, 0.0
          %888 = vst [vmem:[#allocation5] sm:$0xff] 0.0
          %889 = vst [vmem:[#allocation5 + $0x8] sm:$0xff] 0.0
          %890 = vst [vmem:[#allocation5 + $0x10] sm:$0xff] 0.0
          %891 = vst [vmem:[#allocation5 + $0x18] sm:$0xff] 0.0
          %892 = vst [vmem:[#allocation5 + $0x20] sm:$0xff] 0.0
          %893 = vst [vmem:[#allocation5 + $0x28] sm:$0xff] 0.0
          %894 = vst [vmem:[#allocation5 + $0x30] sm:$0xff] 0.0
          %895 = vst [vmem:[#allocation5 + $0x38] sm:$0xff] 0.0
          %896 = vst [vmem:[#allocation5 + $0x40] sm:$0xff] 0.0
          %897 = vst [vmem:[#allocation5 + $0x48] sm:$0xff] 0.0
          %898 = vst [vmem:[#allocation5 + $0x50] sm:$0xff] 0.0
          %899 = vst [vmem:[#allocation5 + $0x58] sm:$0xff] 0.0
          %900 = vst [vmem:[#allocation5 + $0x60] sm:$0xff] 0.0
          %901 = vst [vmem:[#allocation5 + $0x68] sm:$0xff] 0.0
          %902 = vst [vmem:[#allocation5 + $0x70] sm:$0xff] 0.0
          %903 = vst [vmem:[#allocation5 + $0x78] sm:$0xff] 0.0
        $region104: #{tpu_custom_call.1} parent=59 // pred_fallthru
          _
        %v904 = vld [vmem:[%s519] sm:$0xff]
        %v905 = vld [vmem:[%s519 + $0x8] sm:$0xff]
        %v906 = vld [vmem:[%s519 + $0x10] sm:$0xff]
        %v907 = vld [vmem:[%s519 + $0x18] sm:$0xff]
        %v908 = vld [vmem:[%s519 + $0x20] sm:$0xff]
        %v909 = vld [vmem:[%s519 + $0x28] sm:$0xff]
        %v910 = vld [vmem:[%s519 + $0x30] sm:$0xff]
        %v911 = vld [vmem:[%s519 + $0x38] sm:$0xff]
        %v912 = vld [vmem:[%s519 + $0x40] sm:$0xff]
        %v913 = vld [vmem:[%s519 + $0x48] sm:$0xff]
        %v914 = vld [vmem:[%s519 + $0x50] sm:$0xff]
        %v915 = vld [vmem:[%s519 + $0x58] sm:$0xff]
        %v916 = vld [vmem:[%s519 + $0x60] sm:$0xff]
        %v917 = vld [vmem:[%s519 + $0x68] sm:$0xff]
        %v918 = vld [vmem:[%s519 + $0x70] sm:$0xff]
        %v919 = vld [vmem:[%s519 + $0x78] sm:$0xff]
        %v920 = vld [vmem:[%s493] sm:$0x1]
        %v922 = vlaneseq
        %v923 = vshrl.u32 %v922, 7
        %v924 = vsub.s32 0, %v923
        %v925 = vrot.slane %v920, %v924
        %v927 = vmul.f32 %v904, %v925
        %v928 = vmul.f32 %v905, %v925
        %v929 = vmul.f32 %v906, %v925
        %v930 = vmul.f32 %v907, %v925
        %v931 = vmul.f32 %v908, %v925
        %v932 = vmul.f32 %v909, %v925
        %v933 = vmul.f32 %v910, %v925
        %v934 = vmul.f32 %v911, %v925
        %v935 = vmul.f32 %v912, %v925
        %v936 = vmul.f32 %v913, %v925
        %v937 = vmul.f32 %v914, %v925
        %v938 = vmul.f32 %v915, %v925
        %v939 = vmul.f32 %v916, %v925
        %v940 = vmul.f32 %v917, %v925
        %v941 = vmul.f32 %v918, %v925
        %v942 = vmul.f32 %v919, %v925
        %v943 = vld [vmem:[%s501] sm:$0x1]
        %v945 = vlaneseq
        %v946 = vshrl.u32 %v945, 7
        %v947 = vsub.s32 0, %v946
        %v948 = vrot.slane %v943, %v947
        %v950 = vadd.f32 %v927, %v948
        %v951 = vadd.f32 %v928, %v948
        %v952 = vadd.f32 %v929, %v948
        %v953 = vadd.f32 %v930, %v948
        %v954 = vadd.f32 %v931, %v948
        %v955 = vadd.f32 %v932, %v948
        %v956 = vadd.f32 %v933, %v948
        %v957 = vadd.f32 %v934, %v948
        %v958 = vadd.f32 %v935, %v948
        %v959 = vadd.f32 %v936, %v948
        %v960 = vadd.f32 %v937, %v948
        %v961 = vadd.f32 %v938, %v948
        %v962 = vadd.f32 %v939, %v948
        %v963 = vadd.f32 %v940, %v948
        %v964 = vadd.f32 %v941, %v948
        %v965 = vadd.f32 %v942, %v948
        %v966 = vpack.c.bf16 %v951, %v950
        %v967 = vpack.c.bf16 %v953, %v952
        %v968 = vpack.c.bf16 %v955, %v954
        %v969 = vpack.c.bf16 %v957, %v956
        %v970 = vpack.c.bf16 %v959, %v958
        %v971 = vpack.c.bf16 %v961, %v960
        %v972 = vpack.c.bf16 %v963, %v962
        %v973 = vpack.c.bf16 %v965, %v964
        %v974 = vld [vmem:[#allocation17] sm:$0xff]
        %v975 = vld [vmem:[#allocation17 + $0x8] sm:$0xff]
        %v976 = vld [vmem:[#allocation17 + $0x10] sm:$0xff]
        %v977 = vld [vmem:[#allocation17 + $0x18] sm:$0xff]
        %v978 = vld [vmem:[#allocation17 + $0x20] sm:$0xff]
        %v979 = vld [vmem:[#allocation17 + $0x28] sm:$0xff]
        %v980 = vld [vmem:[#allocation17 + $0x30] sm:$0xff]
        %v981 = vld [vmem:[#allocation17 + $0x38] sm:$0xff]
        %v982 = vld [vmem:[#allocation17 + $0x40] sm:$0xff]
        %v983 = vld [vmem:[#allocation17 + $0x48] sm:$0xff]
        %v984 = vld [vmem:[#allocation17 + $0x50] sm:$0xff]
        %v985 = vld [vmem:[#allocation17 + $0x58] sm:$0xff]
        %v986 = vld [vmem:[#allocation17 + $0x60] sm:$0xff]
        %v987 = vld [vmem:[#allocation17 + $0x68] sm:$0xff]
        %v988 = vld [vmem:[#allocation17 + $0x70] sm:$0xff]
        %v989 = vld [vmem:[#allocation17 + $0x78] sm:$0xff]
        %v990 = vld [vmem:[#allocation18] sm:$0x3]
        %v992 = vlaneseq
        %v993 = vshrl.u32 %v992, 7
        %v994 = vsub.s32 0, %v993
        %v995 = vrot.slane %v990, %v994
        %v996 = vlaneseq
        %v997 = vshrl.u32 %v996, 7
        %v998 = vsub.s32 1, %v997
        %v999 = vrot.slane %v990, %v998
        %v1018 = vunpack.c.l.b16 %v974
        %v1019 = vunpack.c.h.b16 %v974
        %v1020 = vunpack.c.l.b16 %v975
        %v1021 = vunpack.c.h.b16 %v975
        %v1022 = vunpack.c.l.b16 %v976
        %v1023 = vunpack.c.h.b16 %v976
        %v1024 = vunpack.c.l.b16 %v977
        %v1025 = vunpack.c.h.b16 %v977
        %v1026 = vunpack.c.l.b16 %v978
        %v1027 = vunpack.c.h.b16 %v978
        %v1028 = vunpack.c.l.b16 %v979
        %v1029 = vunpack.c.h.b16 %v979
        %v1030 = vunpack.c.l.b16 %v980
        %v1031 = vunpack.c.h.b16 %v980
        %v1032 = vunpack.c.l.b16 %v981
        %v1033 = vunpack.c.h.b16 %v981
        %v1034 = vunpack.c.l.b16 %v982
        %v1035 = vunpack.c.h.b16 %v982
        %v1036 = vunpack.c.l.b16 %v983
        %v1037 = vunpack.c.h.b16 %v983
        %v1038 = vunpack.c.l.b16 %v984
        %v1039 = vunpack.c.h.b16 %v984
        %v1040 = vunpack.c.l.b16 %v985
        %v1041 = vunpack.c.h.b16 %v985
        %v1042 = vunpack.c.l.b16 %v986
        %v1043 = vunpack.c.h.b16 %v986
        %v1044 = vunpack.c.l.b16 %v987
        %v1045 = vunpack.c.h.b16 %v987
        %v1046 = vunpack.c.l.b16 %v988
        %v1047 = vunpack.c.h.b16 %v988
        %v1048 = vunpack.c.l.b16 %v989
        %v1049 = vunpack.c.h.b16 %v989
        %v1050 = vpack.c.b16 %v1020, %v1018
        %v1051 = vpack.c.b16 %v1021, %v1019
        %v1052 = vpack.c.b16 %v1024, %v1022
        %v1053 = vpack.c.b16 %v1025, %v1023
        %v1054 = vpack.c.b16 %v1028, %v1026
        %v1055 = vpack.c.b16 %v1029, %v1027
        %v1056 = vpack.c.b16 %v1032, %v1030
        %v1057 = vpack.c.b16 %v1033, %v1031
        %v1058 = vpack.c.b16 %v1036, %v1034
        %v1059 = vpack.c.b16 %v1037, %v1035
        %v1060 = vpack.c.b16 %v1040, %v1038
        %v1061 = vpack.c.b16 %v1041, %v1039
        %v1062 = vpack.c.b16 %v1044, %v1042
        %v1063 = vpack.c.b16 %v1045, %v1043
        %v1064 = vpack.c.b16 %v1048, %v1046
        %v1065 = vpack.c.b16 %v1049, %v1047
        %1082 = vmatprep.subr.bf16.mxu0 %v1051
        %1083 = vmatpush1.bf16.msra.mxu0 %v1050
        %1084 = vmatprep.subr.bf16.mxu0 %v1053
        %1085 = vmatpush1.bf16.msra.mxu0 %v1052
        %1086 = vmatprep.subr.bf16.mxu0 %v1055
        %1087 = vmatpush1.bf16.msra.mxu0 %v1054
        %1088 = vmatprep.subr.bf16.mxu0 %v1057
        %1089 = vmatpush1.bf16.msra.mxu0 %v1056
        %1090 = vmatprep.subr.bf16.mxu0 %v1059
        %1091 = vmatpush1.bf16.msra.mxu0 %v1058
        %1092 = vmatprep.subr.bf16.mxu0 %v1061
        %1093 = vmatpush1.bf16.msra.mxu0 %v1060
        %1094 = vmatprep.subr.bf16.mxu0 %v1063
        %1095 = vmatpush1.bf16.msra.mxu0 %v1062
        %1096 = vmatprep.subr.bf16.mxu0 %v1065
        %1097 = vmatpush1.bf16.msra.mxu0 %v1064
        %1098 = vmatprep.subr.bf16.mxu0 0
        %1099 = vmatpush1.bf16.msra.mxu0 0
        %1100 = vmatprep.subr.bf16.mxu0 0
        %1101 = vmatpush1.bf16.msra.mxu0 0
        %1102 = vmatprep.subr.bf16.mxu0 0
        %1103 = vmatpush1.bf16.msra.mxu0 0
        %1104 = vmatprep.subr.bf16.mxu0 0
        %1105 = vmatpush1.bf16.msra.mxu0 0
        %1106 = vmatprep.subr.bf16.mxu0 0
        %1107 = vmatpush1.bf16.msra.mxu0 0
        %1108 = vmatprep.subr.bf16.mxu0 0
        %1109 = vmatpush1.bf16.msra.mxu0 0
        %1110 = vmatprep.subr.bf16.mxu0 0
        %1111 = vmatpush1.bf16.msra.mxu0 0
        %1112 = vmatprep.subr.bf16.mxu0 0
        %1113 = vmatpush1.bf16.msra.mxu0 0
        %1114 = vmatprep.mubr.bf16.mxu0 0
        %1115 = vmatmul.mubr.bf16.gmra.mrb[0].mxu0 %v966
        %v1116 = vpop.f32.mrb[0].mxu0
        %v1117 = vadd.f32 %v995, %v1116
        %v1118 = vpop.f32.mrb[0].mxu0
        %v1119 = vadd.f32 %v999, %v1118
        %v1120 = vpop.f32.mrb[0].mxu0
        %v1121 = vadd.f32 %v995, %v1120
        %v1122 = vpop.f32.mrb[0].mxu0
        %v1123 = vadd.f32 %v999, %v1122
        %1124 = vmatprep.mubr.bf16.mxu0 0
        %1125 = vmatmul.mubr.bf16.gmra.mrb[0].mxu0 %v967
        %v1126 = vpop.f32.mrb[0].mxu0
        %v1127 = vadd.f32 %v995, %v1126
        %v1128 = vpop.f32.mrb[0].mxu0
        %v1129 = vadd.f32 %v999, %v1128
        %v1130 = vpop.f32.mrb[0].mxu0
        %v1131 = vadd.f32 %v995, %v1130
        %v1132 = vpop.f32.mrb[0].mxu0
        %v1133 = vadd.f32 %v999, %v1132
        %1134 = vmatprep.mubr.bf16.mxu0 0
        %1135 = vmatmul.mubr.bf16.gmra.mrb[0].mxu0 %v968
        %v1136 = vpop.f32.mrb[0].mxu0
        %v1137 = vadd.f32 %v995, %v1136
        %v1138 = vpop.f32.mrb[0].mxu0
        %v1139 = vadd.f32 %v999, %v1138
        %v1140 = vpop.f32.mrb[0].mxu0
        %v1141 = vadd.f32 %v995, %v1140
        %v1142 = vpop.f32.mrb[0].mxu0
        %v1143 = vadd.f32 %v999, %v1142
        %1144 = vmatprep.mubr.bf16.mxu0 0
        %1145 = vmatmul.mubr.bf16.gmra.mrb[0].mxu0 %v969
        %v1146 = vpop.f32.mrb[0].mxu0
        %v1147 = vadd.f32 %v995, %v1146
        %v1148 = vpop.f32.mrb[0].mxu0
        %v1149 = vadd.f32 %v999, %v1148
        %v1150 = vpop.f32.mrb[0].mxu0
        %v1151 = vadd.f32 %v995, %v1150
        %v1152 = vpop.f32.mrb[0].mxu0
        %v1153 = vadd.f32 %v999, %v1152
        %1154 = vmatprep.mubr.bf16.mxu0 0
        %1155 = vmatmul.mubr.bf16.gmra.mrb[0].mxu0 %v970
        %v1156 = vpop.f32.mrb[0].mxu0
        %v1157 = vadd.f32 %v995, %v1156
        %v1158 = vpop.f32.mrb[0].mxu0
        %v1159 = vadd.f32 %v999, %v1158
        %v1160 = vpop.f32.mrb[0].mxu0
        %v1161 = vadd.f32 %v995, %v1160
        %v1162 = vpop.f32.mrb[0].mxu0
        %v1163 = vadd.f32 %v999, %v1162
        %1164 = vmatprep.mubr.bf16.mxu0 0
        %1165 = vmatmul.mubr.bf16.gmra.mrb[0].mxu0 %v971
        %v1166 = vpop.f32.mrb[0].mxu0
        %v1167 = vadd.f32 %v995, %v1166
        %v1168 = vpop.f32.mrb[0].mxu0
        %v1169 = vadd.f32 %v999, %v1168
        %v1170 = vpop.f32.mrb[0].mxu0
        %v1171 = vadd.f32 %v995, %v1170
        %v1172 = vpop.f32.mrb[0].mxu0
        %v1173 = vadd.f32 %v999, %v1172
        %1174 = vmatprep.mubr.bf16.mxu0 0
        %1175 = vmatmul.mubr.bf16.gmra.mrb[0].mxu0 %v972
        %v1176 = vpop.f32.mrb[0].mxu0
        %v1177 = vadd.f32 %v995, %v1176
        %v1178 = vpop.f32.mrb[0].mxu0
        %v1179 = vadd.f32 %v999, %v1178
        %v1180 = vpop.f32.mrb[0].mxu0
        %v1181 = vadd.f32 %v995, %v1180
        %v1182 = vpop.f32.mrb[0].mxu0
        %v1183 = vadd.f32 %v999, %v1182
        %1184 = vmatprep.mubr.bf16.mxu0 0
        %1185 = vmatmul.mubr.bf16.gmra.mrb[0].mxu0 %v973
        %v1186 = vpop.f32.mrb[0].mxu0
        %v1187 = vadd.f32 %v995, %v1186
        %v1188 = vpop.f32.mrb[0].mxu0
        %v1189 = vadd.f32 %v999, %v1188
        %v1190 = vpop.f32.mrb[0].mxu0
        %v1191 = vadd.f32 %v995, %v1190
        %v1192 = vpop.f32.mrb[0].mxu0
        %v1193 = vadd.f32 %v999, %v1192
        %1194 = vdwg.mxu0
        %v1195 = vpack.c.bf16 %v1121, %v1117
        %v1196 = vpack.c.bf16 %v1131, %v1127
        %v1197 = vpack.c.bf16 %v1141, %v1137
        %v1198 = vpack.c.bf16 %v1151, %v1147
        %v1199 = vpack.c.bf16 %v1161, %v1157
        %v1200 = vpack.c.bf16 %v1171, %v1167
        %v1201 = vpack.c.bf16 %v1181, %v1177
        %v1202 = vpack.c.bf16 %v1191, %v1187
        %v1203 = vpack.c.bf16 %v1123, %v1119
        %v1204 = vpack.c.bf16 %v1133, %v1129
        %v1205 = vpack.c.bf16 %v1143, %v1139
        %v1206 = vpack.c.bf16 %v1153, %v1149
        %v1207 = vpack.c.bf16 %v1163, %v1159
        %v1208 = vpack.c.bf16 %v1173, %v1169
        %v1209 = vpack.c.bf16 %v1183, %v1179
        %v1210 = vpack.c.bf16 %v1193, %v1189
        %v1211 = vld [vmem:[#allocation2] sm:$0xff]
        %v1212 = vld [vmem:[#allocation2 + $0x8] sm:$0xff]
        %v1213 = vld [vmem:[#allocation2 + $0x10] sm:$0xff]
        %v1214 = vld [vmem:[#allocation2 + $0x18] sm:$0xff]
        %v1215 = vld [vmem:[#allocation2 + $0x20] sm:$0xff]
        %v1216 = vld [vmem:[#allocation2 + $0x28] sm:$0xff]
        %v1217 = vld [vmem:[#allocation2 + $0x30] sm:$0xff]
        %v1218 = vld [vmem:[#allocation2 + $0x38] sm:$0xff]
        %1219 = vmatprep.subr.bf16.mxu0 0
        %1220 = vmatpush1.bf16.xpose.msra.mxu0 %v1195
        %1221 = vmatprep.subr.bf16.mxu0 0
        %1222 = vmatpush1.bf16.xpose.msra.mxu0 %v1196
        %1223 = vmatprep.subr.bf16.mxu0 0
        %1224 = vmatpush1.bf16.xpose.msra.mxu0 %v1197
        %1225 = vmatprep.subr.bf16.mxu0 0
        %1226 = vmatpush1.bf16.xpose.msra.mxu0 %v1198
        %1227 = vmatprep.subr.bf16.mxu0 0
        %1228 = vmatpush1.bf16.xpose.msra.mxu0 %v1199
        %1229 = vmatprep.subr.bf16.mxu0 0
        %1230 = vmatpush1.bf16.xpose.msra.mxu0 %v1200
        %1231 = vmatprep.subr.bf16.mxu0 0
        %1232 = vmatpush1.bf16.xpose.msra.mxu0 %v1201
        %1233 = vmatprep.subr.bf16.mxu0 0
        %1234 = vmatpush1.bf16.xpose.msra.mxu0 %v1202
        %1235 = vmatprep.subr.bf16.mxu0 0
        %1236 = vmatpush1.bf16.xpose.msra.mxu0 0
        %1237 = vmatprep.subr.bf16.mxu0 0
        %1238 = vmatpush1.bf16.xpose.msra.mxu0 0
        %1239 = vmatprep.subr.bf16.mxu0 0
        %1240 = vmatpush1.bf16.xpose.msra.mxu0 0
        %1241 = vmatprep.subr.bf16.mxu0 0
        %1242 = vmatpush1.bf16.xpose.msra.mxu0 0
        %1243 = vmatprep.subr.bf16.mxu0 0
        %1244 = vmatpush1.bf16.xpose.msra.mxu0 0
        %1245 = vmatprep.subr.bf16.mxu0 0
        %1246 = vmatpush1.bf16.xpose.msra.mxu0 0
        %1247 = vmatprep.subr.bf16.mxu0 0
        %1248 = vmatpush1.bf16.xpose.msra.mxu0 0
        %1249 = vmatprep.subr.bf16.mxu0 0
        %1250 = vmatpush1.bf16.xpose.msra.mxu0 0
        %1251 = vmatprep.mubr.bf16.mxu0 0
        %1252 = vmatmul.mubr.bf16.gmra.mrb[0].mxu0 %v1211
        %v1253 = vpop.f32.mrb[0].mxu0
        %v1254 = vadd.f32 0.0, %v1253
        %v1255 = vpop.f32.mrb[0].mxu0
        %v1256 = vpop.f32.mrb[0].mxu0
        %v1257 = vadd.f32 0.0, %v1256
        %v1258 = vpop.f32.mrb[0].mxu0
        %1259 = vmatprep.mubr.bf16.mxu0 0
        %1260 = vmatmul.mubr.bf16.gmra.mrb[0].mxu0 %v1212
        %v1261 = vpop.f32.mrb[0].mxu0
        %v1262 = vadd.f32 0.0, %v1261
        %v1263 = vpop.f32.mrb[0].mxu0
        %v1264 = vpop.f32.mrb[0].mxu0
        %v1265 = vadd.f32 0.0, %v1264
        %v1266 = vpop.f32.mrb[0].mxu0
        %1267 = vmatprep.mubr.bf16.mxu0 0
        %1268 = vmatmul.mubr.bf16.gmra.mrb[0].mxu0 %v1213
        %v1269 = vpop.f32.mrb[0].mxu0
        %v1270 = vadd.f32 0.0, %v1269
        %v1271 = vpop.f32.mrb[0].mxu0
        %v1272 = vpop.f32.mrb[0].mxu0
        %v1273 = vadd.f32 0.0, %v1272
        %v1274 = vpop.f32.mrb[0].mxu0
        %1275 = vmatprep.mubr.bf16.mxu0 0
        %1276 = vmatmul.mubr.bf16.gmra.mrb[0].mxu0 %v1214
        %v1277 = vpop.f32.mrb[0].mxu0
        %v1278 = vadd.f32 0.0, %v1277
        %v1279 = vpop.f32.mrb[0].mxu0
        %v1280 = vpop.f32.mrb[0].mxu0
        %v1281 = vadd.f32 0.0, %v1280
        %v1282 = vpop.f32.mrb[0].mxu0
        %1283 = vmatprep.mubr.bf16.mxu0 0
        %1284 = vmatmul.mubr.bf16.gmra.mrb[0].mxu0 %v1215
        %v1285 = vpop.f32.mrb[0].mxu0
        %v1286 = vadd.f32 0.0, %v1285
        %v1287 = vpop.f32.mrb[0].mxu0
        %v1288 = vpop.f32.mrb[0].mxu0
        %v1289 = vadd.f32 0.0, %v1288
        %v1290 = vpop.f32.mrb[0].mxu0
        %1291 = vmatprep.mubr.bf16.mxu0 0
        %1292 = vmatmul.mubr.bf16.gmra.mrb[0].mxu0 %v1216
        %v1293 = vpop.f32.mrb[0].mxu0
        %v1294 = vadd.f32 0.0, %v1293
        %v1295 = vpop.f32.mrb[0].mxu0
        %v1296 = vpop.f32.mrb[0].mxu0
        %v1297 = vadd.f32 0.0, %v1296
        %v1298 = vpop.f32.mrb[0].mxu0
        %1299 = vmatprep.mubr.bf16.mxu0 0
        %1300 = vmatmul.mubr.bf16.gmra.mrb[0].mxu0 %v1217
        %v1301 = vpop.f32.mrb[0].mxu0
        %v1302 = vadd.f32 0.0, %v1301
        %v1303 = vpop.f32.mrb[0].mxu0
        %v1304 = vpop.f32.mrb[0].mxu0
        %v1305 = vadd.f32 0.0, %v1304
        %v1306 = vpop.f32.mrb[0].mxu0
        %1307 = vmatprep.mubr.bf16.mxu0 0
        %1308 = vmatmul.mubr.bf16.gmra.mrb[0].mxu0 %v1218
        %v1309 = vpop.f32.mrb[0].mxu0
        %v1310 = vadd.f32 0.0, %v1309
        %v1311 = vpop.f32.mrb[0].mxu0
        %v1312 = vpop.f32.mrb[0].mxu0
        %v1313 = vadd.f32 0.0, %v1312
        %v1314 = vpop.f32.mrb[0].mxu0
        %1315 = vdwg.mxu0
        %v1316 = vld [vmem:[#allocation3] sm:$0xff]
        %v1317 = vld [vmem:[#allocation3 + $0x8] sm:$0xff]
        %v1318 = vld [vmem:[#allocation3 + $0x10] sm:$0xff]
        %v1319 = vld [vmem:[#allocation3 + $0x18] sm:$0xff]
        %v1320 = vld [vmem:[#allocation3 + $0x20] sm:$0xff]
        %v1321 = vld [vmem:[#allocation3 + $0x28] sm:$0xff]
        %v1322 = vld [vmem:[#allocation3 + $0x30] sm:$0xff]
        %v1323 = vld [vmem:[#allocation3 + $0x38] sm:$0xff]
        %v1324 = vld [vmem:[#allocation3 + $0x40] sm:$0xff]
        %v1325 = vld [vmem:[#allocation3 + $0x48] sm:$0xff]
        %v1326 = vld [vmem:[#allocation3 + $0x50] sm:$0xff]
        %v1327 = vld [vmem:[#allocation3 + $0x58] sm:$0xff]
        %v1328 = vld [vmem:[#allocation3 + $0x60] sm:$0xff]
        %v1329 = vld [vmem:[#allocation3 + $0x68] sm:$0xff]
        %v1330 = vld [vmem:[#allocation3 + $0x70] sm:$0xff]
        %v1331 = vld [vmem:[#allocation3 + $0x78] sm:$0xff]
        %1332 = vmax.xlane.f32.xlu0 %v1254
        %v1333 = vpop.xlane.xlu0 %1332
        %1334 = vmax.xlane.f32.xlu0 %v1257
        %v1335 = vpop.xlane.xlu0 %1334
        %1336 = vmax.xlane.f32.xlu0 %v1262
        %v1337 = vpop.xlane.xlu0 %1336
        %1338 = vmax.xlane.f32.xlu0 %v1265
        %v1339 = vpop.xlane.xlu0 %1338
        %1340 = vmax.xlane.f32.xlu0 %v1270
        %v1341 = vpop.xlane.xlu0 %1340
        %1342 = vmax.xlane.f32.xlu0 %v1273
        %v1343 = vpop.xlane.xlu0 %1342
        %1344 = vmax.xlane.f32.xlu0 %v1278
        %v1345 = vpop.xlane.xlu0 %1344
        %1346 = vmax.xlane.f32.xlu0 %v1281
        %v1347 = vpop.xlane.xlu0 %1346
        %1348 = vmax.xlane.f32.xlu0 %v1286
        %v1349 = vpop.xlane.xlu0 %1348
        %1350 = vmax.xlane.f32.xlu0 %v1289
        %v1351 = vpop.xlane.xlu0 %1350
        %1352 = vmax.xlane.f32.xlu0 %v1294
        %v1353 = vpop.xlane.xlu0 %1352
        %1354 = vmax.xlane.f32.xlu0 %v1297
        %v1355 = vpop.xlane.xlu0 %1354
        %1356 = vmax.xlane.f32.xlu0 %v1302
        %v1357 = vpop.xlane.xlu0 %1356
        %1358 = vmax.xlane.f32.xlu0 %v1305
        %v1359 = vpop.xlane.xlu0 %1358
        %1360 = vmax.xlane.f32.xlu0 %v1310
        %v1361 = vpop.xlane.xlu0 %1360
        %1362 = vmax.xlane.f32.xlu0 %v1313
        %v1363 = vpop.xlane.xlu0 %1362
        %v1364 = vmax.f32 %v1316, %v1333
        %v1365 = vmax.f32 %v1317, %v1335
        %v1366 = vmax.f32 %v1318, %v1337
        %v1367 = vmax.f32 %v1319, %v1339
        %v1368 = vmax.f32 %v1320, %v1341
        %v1369 = vmax.f32 %v1321, %v1343
        %v1370 = vmax.f32 %v1322, %v1345
        %v1371 = vmax.f32 %v1323, %v1347
        %v1372 = vmax.f32 %v1324, %v1349
        %v1373 = vmax.f32 %v1325, %v1351
        %v1374 = vmax.f32 %v1326, %v1353
        %v1375 = vmax.f32 %v1327, %v1355
        %v1376 = vmax.f32 %v1328, %v1357
        %v1377 = vmax.f32 %v1329, %v1359
        %v1378 = vmax.f32 %v1330, %v1361
        %v1379 = vmax.f32 %v1331, %v1363
        %v1380 = vsub.f32 %v1316, %v1364
        %v1381 = vsub.f32 %v1317, %v1365
        %v1382 = vsub.f32 %v1318, %v1366
        %v1383 = vsub.f32 %v1319, %v1367
        %v1384 = vsub.f32 %v1320, %v1368
        %v1385 = vsub.f32 %v1321, %v1369
        %v1386 = vsub.f32 %v1322, %v1370
        %v1387 = vsub.f32 %v1323, %v1371
        %v1388 = vsub.f32 %v1324, %v1372
        %v1389 = vsub.f32 %v1325, %v1373
        %v1390 = vsub.f32 %v1326, %v1374
        %v1391 = vsub.f32 %v1327, %v1375
        %v1392 = vsub.f32 %v1328, %v1376
        %v1393 = vsub.f32 %v1329, %v1377
        %v1394 = vsub.f32 %v1330, %v1378
        %v1395 = vsub.f32 %v1331, %v1379
        %v1396 = vmul.f32 %v1380, 1.442695
        %v1397 = vpow.pop %v1396
        %v1398 = vmul.f32 %v1381, 1.442695
        %v1399 = vpow.pop %v1398
        %v1400 = vmul.f32 %v1382, 1.442695
        %v1401 = vpow.pop %v1400
        %v1402 = vmul.f32 %v1383, 1.442695
        %v1403 = vpow.pop %v1402
        %v1404 = vmul.f32 %v1384, 1.442695
        %v1405 = vpow.pop %v1404
        %v1406 = vmul.f32 %v1385, 1.442695
        %v1407 = vpow.pop %v1406
        %v1408 = vmul.f32 %v1386, 1.442695
        %v1409 = vpow.pop %v1408
        %v1410 = vmul.f32 %v1387, 1.442695
        %v1411 = vpow.pop %v1410
        %v1412 = vmul.f32 %v1388, 1.442695
        %v1413 = vpow.pop %v1412
        %v1414 = vmul.f32 %v1389, 1.442695
        %v1415 = vpow.pop %v1414
        %v1416 = vmul.f32 %v1390, 1.442695
        %v1417 = vpow.pop %v1416
        %v1418 = vmul.f32 %v1391, 1.442695
        %v1419 = vpow.pop %v1418
        %v1420 = vmul.f32 %v1392, 1.442695
        %v1421 = vpow.pop %v1420
        %v1422 = vmul.f32 %v1393, 1.442695
        %v1423 = vpow.pop %v1422
        %v1424 = vmul.f32 %v1394, 1.442695
        %v1425 = vpow.pop %v1424
        %v1426 = vmul.f32 %v1395, 1.442695
        %v1427 = vpow.pop %v1426
        %1429 = vset.pattern.permute.xlu0 0
        %1430 = vperm.xlu0 %1429, %v1364
        %v1431 = vpop.permute.xlu0 %1430
        %1434 = vset.pattern.permute.xlu0 0
        %1435 = vperm.xlu0 %1434, %v1365
        %v1436 = vpop.permute.xlu0 %1435
        %1439 = vset.pattern.permute.xlu0 0
        %1440 = vperm.xlu0 %1439, %v1366
        %v1441 = vpop.permute.xlu0 %1440
        %1444 = vset.pattern.permute.xlu0 0
        %1445 = vperm.xlu0 %1444, %v1367
        %v1446 = vpop.permute.xlu0 %1445
        %1449 = vset.pattern.permute.xlu0 0
        %1450 = vperm.xlu0 %1449, %v1368
        %v1451 = vpop.permute.xlu0 %1450
        %1454 = vset.pattern.permute.xlu0 0
        %1455 = vperm.xlu0 %1454, %v1369
        %v1456 = vpop.permute.xlu0 %1455
        %1459 = vset.pattern.permute.xlu0 0
        %1460 = vperm.xlu0 %1459, %v1370
        %v1461 = vpop.permute.xlu0 %1460
        %1464 = vset.pattern.permute.xlu0 0
        %1465 = vperm.xlu0 %1464, %v1371
        %v1466 = vpop.permute.xlu0 %1465
        %1469 = vset.pattern.permute.xlu0 0
        %1470 = vperm.xlu0 %1469, %v1372
        %v1471 = vpop.permute.xlu0 %1470
        %1474 = vset.pattern.permute.xlu0 0
        %1475 = vperm.xlu0 %1474, %v1373
        %v1476 = vpop.permute.xlu0 %1475
        %1479 = vset.pattern.permute.xlu0 0
        %1480 = vperm.xlu0 %1479, %v1374
        %v1481 = vpop.permute.xlu0 %1480
        %1484 = vset.pattern.permute.xlu0 0
        %1485 = vperm.xlu0 %1484, %v1375
        %v1486 = vpop.permute.xlu0 %1485
        %1489 = vset.pattern.permute.xlu0 0
        %1490 = vperm.xlu0 %1489, %v1376
        %v1491 = vpop.permute.xlu0 %1490
        %1494 = vset.pattern.permute.xlu0 0
        %1495 = vperm.xlu0 %1494, %v1377
        %v1496 = vpop.permute.xlu0 %1495
        %1499 = vset.pattern.permute.xlu0 0
        %1500 = vperm.xlu0 %1499, %v1378
        %v1501 = vpop.permute.xlu0 %1500
        %1504 = vset.pattern.permute.xlu0 0
        %1505 = vperm.xlu0 %1504, %v1379
        %v1506 = vpop.permute.xlu0 %1505
        %v1508 = vsub.f32 %v1254, %v1431
        %v1509 = vsub.f32 %v1257, %v1436
        %v1510 = vsub.f32 %v1262, %v1441
        %v1511 = vsub.f32 %v1265, %v1446
        %v1512 = vsub.f32 %v1270, %v1451
        %v1513 = vsub.f32 %v1273, %v1456
        %v1514 = vsub.f32 %v1278, %v1461
        %v1515 = vsub.f32 %v1281, %v1466
        %v1516 = vsub.f32 %v1286, %v1471
        %v1517 = vsub.f32 %v1289, %v1476
        %v1518 = vsub.f32 %v1294, %v1481
        %v1519 = vsub.f32 %v1297, %v1486
        %v1520 = vsub.f32 %v1302, %v1491
        %v1521 = vsub.f32 %v1305, %v1496
        %v1522 = vsub.f32 %v1310, %v1501
        %v1523 = vsub.f32 %v1313, %v1506
        %v1524 = vmul.f32 %v1508, 1.442695
        %v1525 = vpow.pop %v1524
        %v1526 = vmul.f32 %v1509, 1.442695
        %v1527 = vpow.pop %v1526
        %v1528 = vmul.f32 %v1510, 1.442695
        %v1529 = vpow.pop %v1528
        %v1530 = vmul.f32 %v1511, 1.442695
        %v1531 = vpow.pop %v1530
        %v1532 = vmul.f32 %v1512, 1.442695
        %v1533 = vpow.pop %v1532
        %v1534 = vmul.f32 %v1513, 1.442695
        %v1535 = vpow.pop %v1534
        %v1536 = vmul.f32 %v1514, 1.442695
        %v1537 = vpow.pop %v1536
        %v1538 = vmul.f32 %v1515, 1.442695
        %v1539 = vpow.pop %v1538
        %v1540 = vmul.f32 %v1516, 1.442695
        %v1541 = vpow.pop %v1540
        %v1542 = vmul.f32 %v1517, 1.442695
        %v1543 = vpow.pop %v1542
        %v1544 = vmul.f32 %v1518, 1.442695
        %v1545 = vpow.pop %v1544
        %v1546 = vmul.f32 %v1519, 1.442695
        %v1547 = vpow.pop %v1546
        %v1548 = vmul.f32 %v1520, 1.442695
        %v1549 = vpow.pop %v1548
        %v1550 = vmul.f32 %v1521, 1.442695
        %v1551 = vpow.pop %v1550
        %v1552 = vmul.f32 %v1522, 1.442695
        %v1553 = vpow.pop %v1552
        %v1554 = vmul.f32 %v1523, 1.442695
        %v1555 = vpow.pop %v1554
        %v1556 = vld [vmem:[#allocation4] sm:$0xff]
        %v1557 = vld [vmem:[#allocation4 + $0x8] sm:$0xff]
        %v1558 = vld [vmem:[#allocation4 + $0x10] sm:$0xff]
        %v1559 = vld [vmem:[#allocation4 + $0x18] sm:$0xff]
        %v1560 = vld [vmem:[#allocation4 + $0x20] sm:$0xff]
        %v1561 = vld [vmem:[#allocation4 + $0x28] sm:$0xff]
        %v1562 = vld [vmem:[#allocation4 + $0x30] sm:$0xff]
        %v1563 = vld [vmem:[#allocation4 + $0x38] sm:$0xff]
        %v1564 = vld [vmem:[#allocation4 + $0x40] sm:$0xff]
        %v1565 = vld [vmem:[#allocation4 + $0x48] sm:$0xff]
        %v1566 = vld [vmem:[#allocation4 + $0x50] sm:$0xff]
        %v1567 = vld [vmem:[#allocation4 + $0x58] sm:$0xff]
        %v1568 = vld [vmem:[#allocation4 + $0x60] sm:$0xff]
        %v1569 = vld [vmem:[#allocation4 + $0x68] sm:$0xff]
        %v1570 = vld [vmem:[#allocation4 + $0x70] sm:$0xff]
        %v1571 = vld [vmem:[#allocation4 + $0x78] sm:$0xff]
        %v1572 = vmul.f32 %v1397, %v1556
        %v1573 = vmul.f32 %v1399, %v1557
        %v1574 = vmul.f32 %v1401, %v1558
        %v1575 = vmul.f32 %v1403, %v1559
        %v1576 = vmul.f32 %v1405, %v1560
        %v1577 = vmul.f32 %v1407, %v1561
        %v1578 = vmul.f32 %v1409, %v1562
        %v1579 = vmul.f32 %v1411, %v1563
        %v1580 = vmul.f32 %v1413, %v1564
        %v1581 = vmul.f32 %v1415, %v1565
        %v1582 = vmul.f32 %v1417, %v1566
        %v1583 = vmul.f32 %v1419, %v1567
        %v1584 = vmul.f32 %v1421, %v1568
        %v1585 = vmul.f32 %v1423, %v1569
        %v1586 = vmul.f32 %v1425, %v1570
        %v1587 = vmul.f32 %v1427, %v1571
        %1588 = vadd.xlane.f32.xlu0 %v1525
        %v1589 = vpop.xlane.xlu0 %1588
        %1590 = vadd.xlane.f32.xlu0 %v1527
        %v1591 = vpop.xlane.xlu0 %1590
        %1592 = vadd.xlane.f32.xlu0 %v1529
        %v1593 = vpop.xlane.xlu0 %1592
        %1594 = vadd.xlane.f32.xlu0 %v1531
        %v1595 = vpop.xlane.xlu0 %1594
        %1596 = vadd.xlane.f32.xlu0 %v1533
        %v1597 = vpop.xlane.xlu0 %1596
        %1598 = vadd.xlane.f32.xlu0 %v1535
        %v1599 = vpop.xlane.xlu0 %1598
        %1600 = vadd.xlane.f32.xlu0 %v1537
        %v1601 = vpop.xlane.xlu0 %1600
        %1602 = vadd.xlane.f32.xlu0 %v1539
        %v1603 = vpop.xlane.xlu0 %1602
        %1604 = vadd.xlane.f32.xlu0 %v1541
        %v1605 = vpop.xlane.xlu0 %1604
        %1606 = vadd.xlane.f32.xlu0 %v1543
        %v1607 = vpop.xlane.xlu0 %1606
        %1608 = vadd.xlane.f32.xlu0 %v1545
        %v1609 = vpop.xlane.xlu0 %1608
        %1610 = vadd.xlane.f32.xlu0 %v1547
        %v1611 = vpop.xlane.xlu0 %1610
        %1612 = vadd.xlane.f32.xlu0 %v1549
        %v1613 = vpop.xlane.xlu0 %1612
        %1614 = vadd.xlane.f32.xlu0 %v1551
        %v1615 = vpop.xlane.xlu0 %1614
        %1616 = vadd.xlane.f32.xlu0 %v1553
        %v1617 = vpop.xlane.xlu0 %1616
        %1618 = vadd.xlane.f32.xlu0 %v1555
        %v1619 = vpop.xlane.xlu0 %1618
        %v1620 = vadd.f32 %v1572, %v1589
        %v1621 = vadd.f32 %v1573, %v1591
        %v1622 = vadd.f32 %v1574, %v1593
        %v1623 = vadd.f32 %v1575, %v1595
        %v1624 = vadd.f32 %v1576, %v1597
        %v1625 = vadd.f32 %v1577, %v1599
        %v1626 = vadd.f32 %v1578, %v1601
        %v1627 = vadd.f32 %v1579, %v1603
        %v1628 = vadd.f32 %v1580, %v1605
        %v1629 = vadd.f32 %v1581, %v1607
        %v1630 = vadd.f32 %v1582, %v1609
        %v1631 = vadd.f32 %v1583, %v1611
        %v1632 = vadd.f32 %v1584, %v1613
        %v1633 = vadd.f32 %v1585, %v1615
        %v1634 = vadd.f32 %v1586, %v1617
        %v1635 = vadd.f32 %v1587, %v1619
        %vm1636 = vcmask 7168
        %1637 = vst.msk [vmem:[#allocation4] sm:$0xff] %vm1636, %v1620
        %1638 = vst.msk [vmem:[#allocation4 + $0x8] sm:$0xff] %vm1636, %v1621
        %1639 = vst.msk [vmem:[#allocation4 + $0x10] sm:$0xff] %vm1636, %v1622
        %1640 = vst.msk [vmem:[#allocation4 + $0x18] sm:$0xff] %vm1636, %v1623
        %1641 = vst.msk [vmem:[#allocation4 + $0x20] sm:$0xff] %vm1636, %v1624
        %1642 = vst.msk [vmem:[#allocation4 + $0x28] sm:$0xff] %vm1636, %v1625
        %1643 = vst.msk [vmem:[#allocation4 + $0x30] sm:$0xff] %vm1636, %v1626
        %1644 = vst.msk [vmem:[#allocation4 + $0x38] sm:$0xff] %vm1636, %v1627
        %1645 = vst.msk [vmem:[#allocation4 + $0x40] sm:$0xff] %vm1636, %v1628
        %1646 = vst.msk [vmem:[#allocation4 + $0x48] sm:$0xff] %vm1636, %v1629
        %1647 = vst.msk [vmem:[#allocation4 + $0x50] sm:$0xff] %vm1636, %v1630
        %1648 = vst.msk [vmem:[#allocation4 + $0x58] sm:$0xff] %vm1636, %v1631
        %1649 = vst.msk [vmem:[#allocation4 + $0x60] sm:$0xff] %vm1636, %v1632
        %1650 = vst.msk [vmem:[#allocation4 + $0x68] sm:$0xff] %vm1636, %v1633
        %1651 = vst.msk [vmem:[#allocation4 + $0x70] sm:$0xff] %vm1636, %v1634
        %1652 = vst.msk [vmem:[#allocation4 + $0x78] sm:$0xff] %vm1636, %v1635
        %v1653 = vld [vmem:[#allocation5] sm:$0xff]
        %v1654 = vld [vmem:[#allocation5 + $0x8] sm:$0xff]
        %v1655 = vld [vmem:[#allocation5 + $0x10] sm:$0xff]
        %v1656 = vld [vmem:[#allocation5 + $0x18] sm:$0xff]
        %v1657 = vld [vmem:[#allocation5 + $0x20] sm:$0xff]
        %v1658 = vld [vmem:[#allocation5 + $0x28] sm:$0xff]
        %v1659 = vld [vmem:[#allocation5 + $0x30] sm:$0xff]
        %v1660 = vld [vmem:[#allocation5 + $0x38] sm:$0xff]
        %v1661 = vld [vmem:[#allocation5 + $0x40] sm:$0xff]
        %v1662 = vld [vmem:[#allocation5 + $0x48] sm:$0xff]
        %v1663 = vld [vmem:[#allocation5 + $0x50] sm:$0xff]
        %v1664 = vld [vmem:[#allocation5 + $0x58] sm:$0xff]
        %v1665 = vld [vmem:[#allocation5 + $0x60] sm:$0xff]
        %v1666 = vld [vmem:[#allocation5 + $0x68] sm:$0xff]
        %v1667 = vld [vmem:[#allocation5 + $0x70] sm:$0xff]
        %v1668 = vld [vmem:[#allocation5 + $0x78] sm:$0xff]
        %1670 = vset.pattern.permute.xlu0 0
        %1671 = vperm.xlu0 %1670, %v1397
        %v1672 = vpop.permute.xlu0 %1671
        %1675 = vset.pattern.permute.xlu0 0
        %1676 = vperm.xlu0 %1675, %v1399
        %v1677 = vpop.permute.xlu0 %1676
        %1680 = vset.pattern.permute.xlu0 0
        %1681 = vperm.xlu0 %1680, %v1401
        %v1682 = vpop.permute.xlu0 %1681
        %1685 = vset.pattern.permute.xlu0 0
        %1686 = vperm.xlu0 %1685, %v1403
        %v1687 = vpop.permute.xlu0 %1686
        %1690 = vset.pattern.permute.xlu0 0
        %1691 = vperm.xlu0 %1690, %v1405
        %v1692 = vpop.permute.xlu0 %1691
        %1695 = vset.pattern.permute.xlu0 0
        %1696 = vperm.xlu0 %1695, %v1407
        %v1697 = vpop.permute.xlu0 %1696
        %1700 = vset.pattern.permute.xlu0 0
        %1701 = vperm.xlu0 %1700, %v1409
        %v1702 = vpop.permute.xlu0 %1701
        %1705 = vset.pattern.permute.xlu0 0
        %1706 = vperm.xlu0 %1705, %v1411
        %v1707 = vpop.permute.xlu0 %1706
        %1710 = vset.pattern.permute.xlu0 0
        %1711 = vperm.xlu0 %1710, %v1413
        %v1712 = vpop.permute.xlu0 %1711
        %1715 = vset.pattern.permute.xlu0 0
        %1716 = vperm.xlu0 %1715, %v1415
        %v1717 = vpop.permute.xlu0 %1716
        %1720 = vset.pattern.permute.xlu0 0
        %1721 = vperm.xlu0 %1720, %v1417
        %v1722 = vpop.permute.xlu0 %1721
        %1725 = vset.pattern.permute.xlu0 0
        %1726 = vperm.xlu0 %1725, %v1419
        %v1727 = vpop.permute.xlu0 %1726
        %1730 = vset.pattern.permute.xlu0 0
        %1731 = vperm.xlu0 %1730, %v1421
        %v1732 = vpop.permute.xlu0 %1731
        %1735 = vset.pattern.permute.xlu0 0
        %1736 = vperm.xlu0 %1735, %v1423
        %v1737 = vpop.permute.xlu0 %1736
        %1740 = vset.pattern.permute.xlu0 0
        %1741 = vperm.xlu0 %1740, %v1425
        %v1742 = vpop.permute.xlu0 %1741
        %1745 = vset.pattern.permute.xlu0 0
        %1746 = vperm.xlu0 %1745, %v1427
        %v1747 = vpop.permute.xlu0 %1746
        %v1749 = vmul.f32 %v1672, %v1653
        %v1750 = vmul.f32 %v1677, %v1654
        %v1751 = vmul.f32 %v1682, %v1655
        %v1752 = vmul.f32 %v1687, %v1656
        %v1753 = vmul.f32 %v1692, %v1657
        %v1754 = vmul.f32 %v1697, %v1658
        %v1755 = vmul.f32 %v1702, %v1659
        %v1756 = vmul.f32 %v1707, %v1660
        %v1757 = vmul.f32 %v1712, %v1661
        %v1758 = vmul.f32 %v1717, %v1662
        %v1759 = vmul.f32 %v1722, %v1663
        %v1760 = vmul.f32 %v1727, %v1664
        %v1761 = vmul.f32 %v1732, %v1665
        %v1762 = vmul.f32 %v1737, %v1666
        %v1763 = vmul.f32 %v1742, %v1667
        %v1764 = vmul.f32 %v1747, %v1668
        %v1765 = vpack.c.bf16 %v1527, %v1525
        %v1766 = vpack.c.bf16 %v1531, %v1529
        %v1767 = vpack.c.bf16 %v1535, %v1533
        %v1768 = vpack.c.bf16 %v1539, %v1537
        %v1769 = vpack.c.bf16 %v1543, %v1541
        %v1770 = vpack.c.bf16 %v1547, %v1545
        %v1771 = vpack.c.bf16 %v1551, %v1549
        %v1772 = vpack.c.bf16 %v1555, %v1553
        %1773 = vmatprep.subr.bf16.mxu0 0
        %1774 = vmatpush1.bf16.msra.mxu0 %v1203
        %1775 = vmatprep.subr.bf16.mxu0 0
        %1776 = vmatpush1.bf16.msra.mxu0 %v1204
        %1777 = vmatprep.subr.bf16.mxu0 0
        %1778 = vmatpush1.bf16.msra.mxu0 %v1205
        %1779 = vmatprep.subr.bf16.mxu0 0
        %1780 = vmatpush1.bf16.msra.mxu0 %v1206
        %1781 = vmatprep.subr.bf16.mxu0 0
        %1782 = vmatpush1.bf16.msra.mxu0 %v1207
        %1783 = vmatprep.subr.bf16.mxu0 0
        %1784 = vmatpush1.bf16.msra.mxu0 %v1208
        %1785 = vmatprep.subr.bf16.mxu0 0
        %1786 = vmatpush1.bf16.msra.mxu0 %v1209
        %1787 = vmatprep.subr.bf16.mxu0 0
        %1788 = vmatpush1.bf16.msra.mxu0 %v1210
        %1789 = vmatprep.subr.bf16.mxu0 0
        %1790 = vmatpush1.bf16.msra.mxu0 0
        %1791 = vmatprep.subr.bf16.mxu0 0
        %1792 = vmatpush1.bf16.msra.mxu0 0
        %1793 = vmatprep.subr.bf16.mxu0 0
        %1794 = vmatpush1.bf16.msra.mxu0 0
        %1795 = vmatprep.subr.bf16.mxu0 0
        %1796 = vmatpush1.bf16.msra.mxu0 0
        %1797 = vmatprep.subr.bf16.mxu0 0
        %1798 = vmatpush1.bf16.msra.mxu0 0
        %1799 = vmatprep.subr.bf16.mxu0 0
        %1800 = vmatpush1.bf16.msra.mxu0 0
        %1801 = vmatprep.subr.bf16.mxu0 0
        %1802 = vmatpush1.bf16.msra.mxu0 0
        %1803 = vmatprep.subr.bf16.mxu0 0
        %1804 = vmatpush1.bf16.msra.mxu0 0
        %1805 = vmatprep.mubr.bf16.mxu0 0
        %1806 = vmatmul.mubr.bf16.gmra.mrb[0].mxu0 %v1765
        %v1807 = vpop.f32.mrb[0].mxu0
        %v1808 = vadd.f32 0.0, %v1807
        %v1809 = vpop.f32.mrb[0].mxu0
        %v1810 = vpop.f32.mrb[0].mxu0
        %v1811 = vadd.f32 0.0, %v1810
        %v1812 = vpop.f32.mrb[0].mxu0
        %1813 = vmatprep.mubr.bf16.mxu0 0
        %1814 = vmatmul.mubr.bf16.gmra.mrb[0].mxu0 %v1766
        %v1815 = vpop.f32.mrb[0].mxu0
        %v1816 = vadd.f32 0.0, %v1815
        %v1817 = vpop.f32.mrb[0].mxu0
        %v1818 = vpop.f32.mrb[0].mxu0
        %v1819 = vadd.f32 0.0, %v1818
        %v1820 = vpop.f32.mrb[0].mxu0
        %1821 = vmatprep.mubr.bf16.mxu0 0
        %1822 = vmatmul.mubr.bf16.gmra.mrb[0].mxu0 %v1767
        %v1823 = vpop.f32.mrb[0].mxu0
        %v1824 = vadd.f32 0.0, %v1823
        %v1825 = vpop.f32.mrb[0].mxu0
        %v1826 = vpop.f32.mrb[0].mxu0
        %v1827 = vadd.f32 0.0, %v1826
        %v1828 = vpop.f32.mrb[0].mxu0
        %1829 = vmatprep.mubr.bf16.mxu0 0
        %1830 = vmatmul.mubr.bf16.gmra.mrb[0].mxu0 %v1768
        %v1831 = vpop.f32.mrb[0].mxu0
        %v1832 = vadd.f32 0.0, %v1831
        %v1833 = vpop.f32.mrb[0].mxu0
        %v1834 = vpop.f32.mrb[0].mxu0
        %v1835 = vadd.f32 0.0, %v1834
        %v1836 = vpop.f32.mrb[0].mxu0
        %1837 = vmatprep.mubr.bf16.mxu0 0
        %1838 = vmatmul.mubr.bf16.gmra.mrb[0].mxu0 %v1769
        %v1839 = vpop.f32.mrb[0].mxu0
        %v1840 = vadd.f32 0.0, %v1839
        %v1841 = vpop.f32.mrb[0].mxu0
        %v1842 = vpop.f32.mrb[0].mxu0
        %v1843 = vadd.f32 0.0, %v1842
        %v1844 = vpop.f32.mrb[0].mxu0
        %1845 = vmatprep.mubr.bf16.mxu0 0
        %1846 = vmatmul.mubr.bf16.gmra.mrb[0].mxu0 %v1770
        %v1847 = vpop.f32.mrb[0].mxu0
        %v1848 = vadd.f32 0.0, %v1847
        %v1849 = vpop.f32.mrb[0].mxu0
        %v1850 = vpop.f32.mrb[0].mxu0
        %v1851 = vadd.f32 0.0, %v1850
        %v1852 = vpop.f32.mrb[0].mxu0
        %1853 = vmatprep.mubr.bf16.mxu0 0
        %1854 = vmatmul.mubr.bf16.gmra.mrb[0].mxu0 %v1771
        %v1855 = vpop.f32.mrb[0].mxu0
        %v1856 = vadd.f32 0.0, %v1855
        %v1857 = vpop.f32.mrb[0].mxu0
        %v1858 = vpop.f32.mrb[0].mxu0
        %v1859 = vadd.f32 0.0, %v1858
        %v1860 = vpop.f32.mrb[0].mxu0
        %1861 = vmatprep.mubr.bf16.mxu0 0
        %1862 = vmatmul.mubr.bf16.gmra.mrb[0].mxu0 %v1772
        %v1863 = vpop.f32.mrb[0].mxu0
        %v1864 = vadd.f32 0.0, %v1863
        %v1865 = vpop.f32.mrb[0].mxu0
        %v1866 = vpop.f32.mrb[0].mxu0
        %v1867 = vadd.f32 0.0, %v1866
        %v1868 = vpop.f32.mrb[0].mxu0
        %1869 = vdwg.mxu0
        %v1870 = vadd.f32 %v1749, %v1808
        %v1871 = vadd.f32 %v1750, %v1811
        %v1872 = vadd.f32 %v1751, %v1816
        %v1873 = vadd.f32 %v1752, %v1819
        %v1874 = vadd.f32 %v1753, %v1824
        %v1875 = vadd.f32 %v1754, %v1827
        %v1876 = vadd.f32 %v1755, %v1832
        %v1877 = vadd.f32 %v1756, %v1835
        %v1878 = vadd.f32 %v1757, %v1840
        %v1879 = vadd.f32 %v1758, %v1843
        %v1880 = vadd.f32 %v1759, %v1848
        %v1881 = vadd.f32 %v1760, %v1851
        %v1882 = vadd.f32 %v1761, %v1856
        %v1883 = vadd.f32 %v1762, %v1859
        %v1884 = vadd.f32 %v1763, %v1864
        %v1885 = vadd.f32 %v1764, %v1867
        %1886 = vst [vmem:[#allocation5] sm:$0xff] %v1870
        %1887 = vst [vmem:[#allocation5 + $0x8] sm:$0xff] %v1871
        %1888 = vst [vmem:[#allocation5 + $0x10] sm:$0xff] %v1872
        %1889 = vst [vmem:[#allocation5 + $0x18] sm:$0xff] %v1873
        %1890 = vst [vmem:[#allocation5 + $0x20] sm:$0xff] %v1874
        %1891 = vst [vmem:[#allocation5 + $0x28] sm:$0xff] %v1875
        %1892 = vst [vmem:[#allocation5 + $0x30] sm:$0xff] %v1876
        %1893 = vst [vmem:[#allocation5 + $0x38] sm:$0xff] %v1877
        %1894 = vst [vmem:[#allocation5 + $0x40] sm:$0xff] %v1878
        %1895 = vst [vmem:[#allocation5 + $0x48] sm:$0xff] %v1879
        %1896 = vst [vmem:[#allocation5 + $0x50] sm:$0xff] %v1880
        %1897 = vst [vmem:[#allocation5 + $0x58] sm:$0xff] %v1881
        %1898 = vst [vmem:[#allocation5 + $0x60] sm:$0xff] %v1882
        %1899 = vst [vmem:[#allocation5 + $0x68] sm:$0xff] %v1883
        %1900 = vst [vmem:[#allocation5 + $0x70] sm:$0xff] %v1884
        %1901 = vst [vmem:[#allocation5 + $0x78] sm:$0xff] %v1885
        %1902 = vst.msk [vmem:[#allocation3] sm:$0xff] %vm1636, %v1364
        %1903 = vst.msk [vmem:[#allocation3 + $0x8] sm:$0xff] %vm1636, %v1365
        %1904 = vst.msk [vmem:[#allocation3 + $0x10] sm:$0xff] %vm1636, %v1366
        %1905 = vst.msk [vmem:[#allocation3 + $0x18] sm:$0xff] %vm1636, %v1367
        %1906 = vst.msk [vmem:[#allocation3 + $0x20] sm:$0xff] %vm1636, %v1368
        %1907 = vst.msk [vmem:[#allocation3 + $0x28] sm:$0xff] %vm1636, %v1369
        %1908 = vst.msk [vmem:[#allocation3 + $0x30] sm:$0xff] %vm1636, %v1370
        %1909 = vst.msk [vmem:[#allocation3 + $0x38] sm:$0xff] %vm1636, %v1371
        %1910 = vst.msk [vmem:[#allocation3 + $0x40] sm:$0xff] %vm1636, %v1372
        %1911 = vst.msk [vmem:[#allocation3 + $0x48] sm:$0xff] %vm1636, %v1373
        %1912 = vst.msk [vmem:[#allocation3 + $0x50] sm:$0xff] %vm1636, %v1374
        %1913 = vst.msk [vmem:[#allocation3 + $0x58] sm:$0xff] %vm1636, %v1375
        %1914 = vst.msk [vmem:[#allocation3 + $0x60] sm:$0xff] %vm1636, %v1376
        %1915 = vst.msk [vmem:[#allocation3 + $0x68] sm:$0xff] %vm1636, %v1377
        %1916 = vst.msk [vmem:[#allocation3 + $0x70] sm:$0xff] %vm1636, %v1378
        %1917 = vst.msk [vmem:[#allocation3 + $0x78] sm:$0xff] %vm1636, %v1379
        %p1918 = scmp.eq.s32.totalorder %s43, 1
        // Predicated region
        $region105: #{tpu_custom_call.1} parent=59 // pred_check
          %p1919 = pneg %p1918
        $region106: #{tpu_custom_call.1} parent=59 // pred_check_branch
          %1921 = sbr.rel (%p1919) target = $region108
        $region107: #{tpu_custom_call.1} parent=59 // pred_region
          %v1922 = vld [vmem:[#allocation4] sm:$0xff]
          %v1923 = vld [vmem:[#allocation4 + $0x8] sm:$0xff]
          %v1924 = vld [vmem:[#allocation4 + $0x10] sm:$0xff]
          %v1925 = vld [vmem:[#allocation4 + $0x18] sm:$0xff]
          %v1926 = vld [vmem:[#allocation4 + $0x20] sm:$0xff]
          %v1927 = vld [vmem:[#allocation4 + $0x28] sm:$0xff]
          %v1928 = vld [vmem:[#allocation4 + $0x30] sm:$0xff]
          %v1929 = vld [vmem:[#allocation4 + $0x38] sm:$0xff]
          %v1930 = vld [vmem:[#allocation4 + $0x40] sm:$0xff]
          %v1931 = vld [vmem:[#allocation4 + $0x48] sm:$0xff]
          %v1932 = vld [vmem:[#allocation4 + $0x50] sm:$0xff]
          %v1933 = vld [vmem:[#allocation4 + $0x58] sm:$0xff]
          %v1934 = vld [vmem:[#allocation4 + $0x60] sm:$0xff]
          %v1935 = vld [vmem:[#allocation4 + $0x68] sm:$0xff]
          %v1936 = vld [vmem:[#allocation4 + $0x70] sm:$0xff]
          %v1937 = vld [vmem:[#allocation4 + $0x78] sm:$0xff]
          %v1938 = vrcp.pop %v1922
          %v1939 = vrcp.pop %v1923
          %v1940 = vrcp.pop %v1924
          %v1941 = vrcp.pop %v1925
          %v1942 = vrcp.pop %v1926
          %v1943 = vrcp.pop %v1927
          %v1944 = vrcp.pop %v1928
          %v1945 = vrcp.pop %v1929
          %v1946 = vrcp.pop %v1930
          %v1947 = vrcp.pop %v1931
          %v1948 = vrcp.pop %v1932
          %v1949 = vrcp.pop %v1933
          %v1950 = vrcp.pop %v1934
          %v1951 = vrcp.pop %v1935
          %v1952 = vrcp.pop %v1936
          %v1953 = vrcp.pop %v1937
          %v1954 = vld [vmem:[#allocation5] sm:$0xff]
          %v1955 = vld [vmem:[#allocation5 + $0x8] sm:$0xff]
          %v1956 = vld [vmem:[#allocation5 + $0x10] sm:$0xff]
          %v1957 = vld [vmem:[#allocation5 + $0x18] sm:$0xff]
          %v1958 = vld [vmem:[#allocation5 + $0x20] sm:$0xff]
          %v1959 = vld [vmem:[#allocation5 + $0x28] sm:$0xff]
          %v1960 = vld [vmem:[#allocation5 + $0x30] sm:$0xff]
          %v1961 = vld [vmem:[#allocation5 + $0x38] sm:$0xff]
          %v1962 = vld [vmem:[#allocation5 + $0x40] sm:$0xff]
          %v1963 = vld [vmem:[#allocation5 + $0x48] sm:$0xff]
          %v1964 = vld [vmem:[#allocation5 + $0x50] sm:$0xff]
          %v1965 = vld [vmem:[#allocation5 + $0x58] sm:$0xff]
          %v1966 = vld [vmem:[#allocation5 + $0x60] sm:$0xff]
          %v1967 = vld [vmem:[#allocation5 + $0x68] sm:$0xff]
          %v1968 = vld [vmem:[#allocation5 + $0x70] sm:$0xff]
          %v1969 = vld [vmem:[#allocation5 + $0x78] sm:$0xff]
          %1971 = vset.pattern.permute.xlu0 0
          %1972 = vperm.xlu0 %1971, %v1938
          %v1973 = vpop.permute.xlu0 %1972
          %1976 = vset.pattern.permute.xlu0 0
          %1977 = vperm.xlu0 %1976, %v1939
          %v1978 = vpop.permute.xlu0 %1977
          %1981 = vset.pattern.permute.xlu0 0
          %1982 = vperm.xlu0 %1981, %v1940
          %v1983 = vpop.permute.xlu0 %1982
          %1986 = vset.pattern.permute.xlu0 0
          %1987 = vperm.xlu0 %1986, %v1941
          %v1988 = vpop.permute.xlu0 %1987
          %1991 = vset.pattern.permute.xlu0 0
          %1992 = vperm.xlu0 %1991, %v1942
          %v1993 = vpop.permute.xlu0 %1992
          %1996 = vset.pattern.permute.xlu0 0
          %1997 = vperm.xlu0 %1996, %v1943
          %v1998 = vpop.permute.xlu0 %1997
          %2001 = vset.pattern.permute.xlu0 0
          %2002 = vperm.xlu0 %2001, %v1944
          %v2003 = vpop.permute.xlu0 %2002
          %2006 = vset.pattern.permute.xlu0 0
          %2007 = vperm.xlu0 %2006, %v1945
          %v2008 = vpop.permute.xlu0 %2007
          %2011 = vset.pattern.permute.xlu0 0
          %2012 = vperm.xlu0 %2011, %v1946
          %v2013 = vpop.permute.xlu0 %2012
          %2016 = vset.pattern.permute.xlu0 0
          %2017 = vperm.xlu0 %2016, %v1947
          %v2018 = vpop.permute.xlu0 %2017
          %2021 = vset.pattern.permute.xlu0 0
          %2022 = vperm.xlu0 %2021, %v1948
          %v2023 = vpop.permute.xlu0 %2022
          %2026 = vset.pattern.permute.xlu0 0
          %2027 = vperm.xlu0 %2026, %v1949
          %v2028 = vpop.permute.xlu0 %2027
          %2031 = vset.pattern.permute.xlu0 0
          %2032 = vperm.xlu0 %2031, %v1950
          %v2033 = vpop.permute.xlu0 %2032
          %2036 = vset.pattern.permute.xlu0 0
          %2037 = vperm.xlu0 %2036, %v1951
          %v2038 = vpop.permute.xlu0 %2037
          %2041 = vset.pattern.permute.xlu0 0
          %2042 = vperm.xlu0 %2041, %v1952
          %v2043 = vpop.permute.xlu0 %2042
          %2046 = vset.pattern.permute.xlu0 0
          %2047 = vperm.xlu0 %2046, %v1953
          %v2048 = vpop.permute.xlu0 %2047
          %v2050 = vmul.f32 %v1954, %v1973
          %v2051 = vmul.f32 %v1955, %v1978
          %v2052 = vmul.f32 %v1956, %v1983
          %v2053 = vmul.f32 %v1957, %v1988
          %v2054 = vmul.f32 %v1958, %v1993
          %v2055 = vmul.f32 %v1959, %v1998
          %v2056 = vmul.f32 %v1960, %v2003
          %v2057 = vmul.f32 %v1961, %v2008
          %v2058 = vmul.f32 %v1962, %v2013
          %v2059 = vmul.f32 %v1963, %v2018
          %v2060 = vmul.f32 %v1964, %v2023
          %v2061 = vmul.f32 %v1965, %v2028
          %v2062 = vmul.f32 %v1966, %v2033
          %v2063 = vmul.f32 %v1967, %v2038
          %v2064 = vmul.f32 %v1968, %v2043
          %v2065 = vmul.f32 %v1969, %v2048
          %v2066 = vpack.c.bf16 %v2051, %v2050
          %v2067 = vpack.c.bf16 %v2053, %v2052
          %v2068 = vpack.c.bf16 %v2055, %v2054
          %v2069 = vpack.c.bf16 %v2057, %v2056
          %v2070 = vpack.c.bf16 %v2059, %v2058
          %v2071 = vpack.c.bf16 %v2061, %v2060
          %v2072 = vpack.c.bf16 %v2063, %v2062
          %v2073 = vpack.c.bf16 %v2065, %v2064
          %v2074 = vld [vmem:[#allocation20] sm:$0xf]
          %v2075 = vld [vmem:[#allocation20 + $0x4] sm:$0xf]
          %v2076 = vld [vmem:[#allocation20 + $0x8] sm:$0xf]
          %v2077 = vld [vmem:[#allocation20 + $0xc] sm:$0xf]
          %v2078 = vld [vmem:[#allocation20 + $0x10] sm:$0xf]
          %v2079 = vld [vmem:[#allocation20 + $0x14] sm:$0xf]
          %v2080 = vld [vmem:[#allocation20 + $0x18] sm:$0xf]
          %v2081 = vld [vmem:[#allocation20 + $0x1c] sm:$0xf]
          %v2082 = vld [vmem:[#allocation20 + $0x20] sm:$0xf]
          %v2083 = vld [vmem:[#allocation20 + $0x24] sm:$0xf]
          %v2084 = vld [vmem:[#allocation20 + $0x28] sm:$0xf]
          %v2085 = vld [vmem:[#allocation20 + $0x2c] sm:$0xf]
          %v2086 = vld [vmem:[#allocation20 + $0x30] sm:$0xf]
          %v2087 = vld [vmem:[#allocation20 + $0x34] sm:$0xf]
          %v2088 = vld [vmem:[#allocation20 + $0x38] sm:$0xf]
          %v2089 = vld [vmem:[#allocation20 + $0x3c] sm:$0xf]
          %v2090 = vld [vmem:[#allocation21] sm:$0x1]
          %v2092 = vlaneseq
          %v2093 = vshrl.u32 %v2092, 7
          %v2094 = vsub.s32 0, %v2093
          %v2095 = vrot.slane %v2090, %v2094
          %v2113 = vunpack.c.l.b16 %v2074
          %v2114 = vunpack.c.l.b16 %v2075
          %v2115 = vunpack.c.l.b16 %v2076
          %v2116 = vunpack.c.l.b16 %v2077
          %v2117 = vunpack.c.l.b16 %v2078
          %v2118 = vunpack.c.l.b16 %v2079
          %v2119 = vunpack.c.l.b16 %v2080
          %v2120 = vunpack.c.l.b16 %v2081
          %v2121 = vunpack.c.l.b16 %v2082
          %v2122 = vunpack.c.l.b16 %v2083
          %v2123 = vunpack.c.l.b16 %v2084
          %v2124 = vunpack.c.l.b16 %v2085
          %v2125 = vunpack.c.l.b16 %v2086
          %v2126 = vunpack.c.l.b16 %v2087
          %v2127 = vunpack.c.l.b16 %v2088
          %v2128 = vunpack.c.l.b16 %v2089
          %v2129 = vpack.c.b16 %v2114, %v2113
          %v2130 = vpack.c.b16 %v2116, %v2115
          %v2131 = vpack.c.b16 %v2118, %v2117
          %v2132 = vpack.c.b16 %v2120, %v2119
          %v2133 = vpack.c.b16 %v2122, %v2121
          %v2134 = vpack.c.b16 %v2124, %v2123
          %v2135 = vpack.c.b16 %v2126, %v2125
          %v2136 = vpack.c.b16 %v2128, %v2127
          %2145 = vmatprep.subr.bf16.mxu0 0
          %2146 = vmatpush1.bf16.msra.mxu0 %v2129
          %2147 = vmatprep.subr.bf16.mxu0 0
          %2148 = vmatpush1.bf16.msra.mxu0 %v2130
          %2149 = vmatprep.subr.bf16.mxu0 0
          %2150 = vmatpush1.bf16.msra.mxu0 %v2131
          %2151 = vmatprep.subr.bf16.mxu0 0
          %2152 = vmatpush1.bf16.msra.mxu0 %v2132
          %2153 = vmatprep.subr.bf16.mxu0 0
          %2154 = vmatpush1.bf16.msra.mxu0 %v2133
          %2155 = vmatprep.subr.bf16.mxu0 0
          %2156 = vmatpush1.bf16.msra.mxu0 %v2134
          %2157 = vmatprep.subr.bf16.mxu0 0
          %2158 = vmatpush1.bf16.msra.mxu0 %v2135
          %2159 = vmatprep.subr.bf16.mxu0 0
          %2160 = vmatpush1.bf16.msra.mxu0 %v2136
          %2161 = vmatprep.subr.bf16.mxu0 0
          %2162 = vmatpush1.bf16.msra.mxu0 0
          %2163 = vmatprep.subr.bf16.mxu0 0
          %2164 = vmatpush1.bf16.msra.mxu0 0
          %2165 = vmatprep.subr.bf16.mxu0 0
          %2166 = vmatpush1.bf16.msra.mxu0 0
          %2167 = vmatprep.subr.bf16.mxu0 0
          %2168 = vmatpush1.bf16.msra.mxu0 0
          %2169 = vmatprep.subr.bf16.mxu0 0
          %2170 = vmatpush1.bf16.msra.mxu0 0
          %2171 = vmatprep.subr.bf16.mxu0 0
          %2172 = vmatpush1.bf16.msra.mxu0 0
          %2173 = vmatprep.subr.bf16.mxu0 0
          %2174 = vmatpush1.bf16.msra.mxu0 0
          %2175 = vmatprep.subr.bf16.mxu0 0
          %2176 = vmatpush1.bf16.msra.mxu0 0
          %2177 = vmatprep.mubr.bf16.mxu0 0
          %2178 = vmatmul.mubr.bf16.gmra.mrb[0].mxu0 %v2066
          %v2179 = vpop.f32.mrb[0].mxu0
          %v2180 = vadd.f32 %v2095, %v2179
          %v2181 = vpop.f32.mrb[0].mxu0
          %v2182 = vpop.f32.mrb[0].mxu0
          %v2183 = vadd.f32 %v2095, %v2182
          %v2184 = vpop.f32.mrb[0].mxu0
          %2185 = vmatprep.mubr.bf16.mxu0 0
          %2186 = vmatmul.mubr.bf16.gmra.mrb[0].mxu0 %v2067
          %v2187 = vpop.f32.mrb[0].mxu0
          %v2188 = vadd.f32 %v2095, %v2187
          %v2189 = vpop.f32.mrb[0].mxu0
          %v2190 = vpop.f32.mrb[0].mxu0
          %v2191 = vadd.f32 %v2095, %v2190
          %v2192 = vpop.f32.mrb[0].mxu0
          %2193 = vmatprep.mubr.bf16.mxu0 0
          %2194 = vmatmul.mubr.bf16.gmra.mrb[0].mxu0 %v2068
          %v2195 = vpop.f32.mrb[0].mxu0
          %v2196 = vadd.f32 %v2095, %v2195
          %v2197 = vpop.f32.mrb[0].mxu0
          %v2198 = vpop.f32.mrb[0].mxu0
          %v2199 = vadd.f32 %v2095, %v2198
          %v2200 = vpop.f32.mrb[0].mxu0
          %2201 = vmatprep.mubr.bf16.mxu0 0
          %2202 = vmatmul.mubr.bf16.gmra.mrb[0].mxu0 %v2069
          %v2203 = vpop.f32.mrb[0].mxu0
          %v2204 = vadd.f32 %v2095, %v2203
          %v2205 = vpop.f32.mrb[0].mxu0
          %v2206 = vpop.f32.mrb[0].mxu0
          %v2207 = vadd.f32 %v2095, %v2206
          %v2208 = vpop.f32.mrb[0].mxu0
          %2209 = vmatprep.mubr.bf16.mxu0 0
          %2210 = vmatmul.mubr.bf16.gmra.mrb[0].mxu0 %v2070
          %v2211 = vpop.f32.mrb[0].mxu0
          %v2212 = vadd.f32 %v2095, %v2211
          %v2213 = vpop.f32.mrb[0].mxu0
          %v2214 = vpop.f32.mrb[0].mxu0
          %v2215 = vadd.f32 %v2095, %v2214
          %v2216 = vpop.f32.mrb[0].mxu0
          %2217 = vmatprep.mubr.bf16.mxu0 0
          %2218 = vmatmul.mubr.bf16.gmra.mrb[0].mxu0 %v2071
          %v2219 = vpop.f32.mrb[0].mxu0
          %v2220 = vadd.f32 %v2095, %v2219
          %v2221 = vpop.f32.mrb[0].mxu0
          %v2222 = vpop.f32.mrb[0].mxu0
          %v2223 = vadd.f32 %v2095, %v2222
          %v2224 = vpop.f32.mrb[0].mxu0
          %2225 = vmatprep.mubr.bf16.mxu0 0
          %2226 = vmatmul.mubr.bf16.gmra.mrb[0].mxu0 %v2072
          %v2227 = vpop.f32.mrb[0].mxu0
          %v2228 = vadd.f32 %v2095, %v2227
          %v2229 = vpop.f32.mrb[0].mxu0
          %v2230 = vpop.f32.mrb[0].mxu0
          %v2231 = vadd.f32 %v2095, %v2230
          %v2232 = vpop.f32.mrb[0].mxu0
          %2233 = vmatprep.mubr.bf16.mxu0 0
          %2234 = vmatmul.mubr.bf16.gmra.mrb[0].mxu0 %v2073
          %v2235 = vpop.f32.mrb[0].mxu0
          %v2236 = vadd.f32 %v2095, %v2235
          %v2237 = vpop.f32.mrb[0].mxu0
          %v2238 = vpop.f32.mrb[0].mxu0
          %v2239 = vadd.f32 %v2095, %v2238
          %v2240 = vpop.f32.mrb[0].mxu0
          %2241 = vdwg.mxu0
          %v2242 = vld [vmem:[%s510] sm:$0xff]
          %v2243 = vld [vmem:[%s510 + $0x8] sm:$0xff]
          %v2244 = vld [vmem:[%s510 + $0x10] sm:$0xff]
          %v2245 = vld [vmem:[%s510 + $0x18] sm:$0xff]
          %v2246 = vld [vmem:[%s510 + $0x20] sm:$0xff]
          %v2247 = vld [vmem:[%s510 + $0x28] sm:$0xff]
          %v2248 = vld [vmem:[%s510 + $0x30] sm:$0xff]
          %v2249 = vld [vmem:[%s510 + $0x38] sm:$0xff]
          %v2250 = vld [vmem:[%s510 + $0x40] sm:$0xff]
          %v2251 = vld [vmem:[%s510 + $0x48] sm:$0xff]
          %v2252 = vld [vmem:[%s510 + $0x50] sm:$0xff]
          %v2253 = vld [vmem:[%s510 + $0x58] sm:$0xff]
          %v2254 = vld [vmem:[%s510 + $0x60] sm:$0xff]
          %v2255 = vld [vmem:[%s510 + $0x68] sm:$0xff]
          %v2256 = vld [vmem:[%s510 + $0x70] sm:$0xff]
          %v2257 = vld [vmem:[%s510 + $0x78] sm:$0xff]
          %v2258 = vadd.f32 %v2242, %v2180
          %v2259 = vadd.f32 %v2243, %v2183
          %v2260 = vadd.f32 %v2244, %v2188
          %v2261 = vadd.f32 %v2245, %v2191
          %v2262 = vadd.f32 %v2246, %v2196
          %v2263 = vadd.f32 %v2247, %v2199
          %v2264 = vadd.f32 %v2248, %v2204
          %v2265 = vadd.f32 %v2249, %v2207
          %v2266 = vadd.f32 %v2250, %v2212
          %v2267 = vadd.f32 %v2251, %v2215
          %v2268 = vadd.f32 %v2252, %v2220
          %v2269 = vadd.f32 %v2253, %v2223
          %v2270 = vadd.f32 %v2254, %v2228
          %v2271 = vadd.f32 %v2255, %v2231
          %v2272 = vadd.f32 %v2256, %v2236
          %v2273 = vadd.f32 %v2257, %v2239
          %2274 = vst [vmem:[%s592] sm:$0xff] %v2258
          %2275 = vst [vmem:[%s592 + $0x8] sm:$0xff] %v2259
          %2276 = vst [vmem:[%s592 + $0x10] sm:$0xff] %v2260
          %2277 = vst [vmem:[%s592 + $0x18] sm:$0xff] %v2261
          %2278 = vst [vmem:[%s592 + $0x20] sm:$0xff] %v2262
          %2279 = vst [vmem:[%s592 + $0x28] sm:$0xff] %v2263
          %2280 = vst [vmem:[%s592 + $0x30] sm:$0xff] %v2264
          %2281 = vst [vmem:[%s592 + $0x38] sm:$0xff] %v2265
          %2282 = vst [vmem:[%s592 + $0x40] sm:$0xff] %v2266
          %2283 = vst [vmem:[%s592 + $0x48] sm:$0xff] %v2267
          %2284 = vst [vmem:[%s592 + $0x50] sm:$0xff] %v2268
          %2285 = vst [vmem:[%s592 + $0x58] sm:$0xff] %v2269
          %2286 = vst [vmem:[%s592 + $0x60] sm:$0xff] %v2270
          %2287 = vst [vmem:[%s592 + $0x68] sm:$0xff] %v2271
          %2288 = vst [vmem:[%s592 + $0x70] sm:$0xff] %v2272
          %2289 = vst [vmem:[%s592 + $0x78] sm:$0xff] %v2273
        $region108: #{tpu_custom_call.1} parent=59 // pred_fallthru
          _
        %s2290 = sand.u32 %s299, 1
        %s2291 = scalar_lea.sflag [#allocation8], %s2290
        %s2292 = sand.u32 %s299, 1
        %s2293 = smul.addr %s2292, 128
        %s2294 = scalar_lea.vmem [#allocation23], %s2293
        // Predicated region
        $region109: #{tpu_custom_call.1} parent=59 // pred_check
          %p2295 = pneg %p309
        $region110: #{tpu_custom_call.1} parent=59 // pred_check_branch
          %2297 = sbr.rel (%p2295) target = $region112
        $region111: #{tpu_custom_call.1} parent=59 // pred_region
          %s2298 = smul.u32 16, %s42
          %s2300 = ssub.s32 2048, 2048
          %2301 = vsyncadd %s2291, %s2300
          %s2302 = smul.addr %s41, 32
          %s2303 = sadd.s32 %s2298, %s2302
          %s2304 = smul.addr %s2303, 128
          %s2305 = scalar_lea.hbm %s10, %s2304
          %s2306 = sshll.u32 %s2294, 4
          %s2307 = int_to_ptr.vmem [resolvable:$true] %s2306
          %2312 = dma.vmem_to_hbm [thread:$0]  %s2307, 2048, %s2305, %s2291, 128, 128, 8
        $region112: #{tpu_custom_call.1} parent=59 // pred_fallthru
          _
      $region60: #{tpu_custom_call.1} parent=5 // pred_fallthru
        _
      %p2313 = scmp.le.s32.totalorder 2, %s31
      // Predicated region
      $region113: #{tpu_custom_call.1} parent=5 // pred_check
        %p2314 = pneg %p2313
      $region114: #{tpu_custom_call.1} parent=5 // pred_check_branch
        %2316 = sbr.rel (%p2314) target = $region116
      $region115: #{tpu_custom_call.1} parent=5 // pred_region
        %s2317 = ssub.s32 %s31, 2
        // Predicated region
        $region117: #{tpu_custom_call.1} parent=115 // pred_check
          %p2318 = pneg %p315
        $region118: #{tpu_custom_call.1} parent=115 // pred_check_branch
          %2320 = sbr.rel (%p2318) target = $region120
        $region119: #{tpu_custom_call.1} parent=115 // pred_region
          %s2321 = sand.u32 %s300, 1
          %s2322 = scalar_lea.sflag [#allocation8], %s2321
          %s2323 = sand.u32 %s300, 1
          %s2324 = smul.addr %s2323, 128
          %s2325 = scalar_lea.vmem [#allocation23], %s2324
          %2326 = dma.done %s2322, 2048
        $region120: #{tpu_custom_call.1} parent=115 // pred_fallthru
          _
      $region116: #{tpu_custom_call.1} parent=5 // pred_fallthru
        _
    $region6: #{tpu_custom_call.1} parent=1 // loop_footer
      %s35 = sadd.s32 1, %s31
    $region7: #{tpu_custom_call.1} parent=1 // loop_footer_branch
      %30 = sbr.rel target = $region3
    $region8: #{tpu_custom_call.1} parent=1 // loop_exit
      _
    %2327 = vsyncpa [#allocation7], 1
    %s2328 = scalar_lea.sflag [#allocation7], 1
    %2329 = vsyncpa %s2328, 1
    %2330 = vsyncpa [#allocation10], 1
    %s2331 = scalar_lea.sflag [#allocation10], 1
    %2332 = vsyncpa %s2331, 1
    %2333 = vsyncpa [#allocation13], 1
    %s2334 = scalar_lea.sflag [#allocation13], 1
    %2335 = vsyncpa %s2334, 1
    %2336 = vsyncpa [#allocation16], 1
    %2337 = vsyncpa [#allocation19], 1
    %2338 = vsyncpa [#allocation22], 1
    %2339 = vsyncpa [#allocation8], 1
    %s2340 = scalar_lea.sflag [#allocation8], 1
    %2341 = vsyncpa %s2340, 1

</llo_original>
